<compile_context>
chip_gen: v6e
topology: v6e:2x2x1
jax: 0.10.0
libtpu: 0.0.40
codegen_flags: <defaults>
</compile_context>

<pallas_src>
import functools
import math
import numpy as np

import jax
import jax.numpy as jnp
from jax.experimental import pallas as pl
from jax.experimental.pallas import tpu as pltpu

# ---- hyperparameters mirroring EmotionInputEncoder.__init__ -----------------
EMB_DIM     = 32
HIDDEN      = 32
NUM_LAYERS  = 1
NUM_HEADS   = 4
KEY_DEPTH   = 32
VALUE_DEPTH = 32
FILTER      = 64
EMO_INPUT   = "self_att"

IN_DIM      = 2 * EMB_DIM
KDPH        = KEY_DEPTH // NUM_HEADS
VDPH        = VALUE_DEPTH // NUM_HEADS
QKV_DIM     = 2 * KEY_DEPTH + VALUE_DEPTH
QUERY_SCALE = float(KDPH) ** -0.5
LN_EPS      = 1e-6
VMAX        = max(HIDDEN, FILTER)
N_VEC       = 6 * NUM_LAYERS + 2   # per layer: ln1g, ln1b, ln2g, ln2b, b1, b2 ; + final ln g, b

# Set to jnp.bfloat16 on v6e/v7x when S / hidden grow (MXU is bf16-native there).
# Keep f32 by default so VPU-side math and numerics match the reference exactly (v5e-safe).
MATMUL_DTYPE = jnp.float32


# ---- sinusoidal timing signal (host-side, cached per shape) -------------------
@functools.lru_cache(maxsize=None)
def gen_timing_signal(length, channels, min_timescale=1.0, max_timescale=1e4):
    position = np.arange(length, dtype=np.float64)
    num_timescales = channels // 2
    log_inc = math.log(float(max_timescale) / float(min_timescale)) / max(num_timescales - 1, 1)
    inv_t = min_timescale * np.exp(np.arange(num_timescales, dtype=np.float64) * -log_inc)
    scaled = position[:, None] * inv_t[None, :]
    sig = np.concatenate([np.sin(scaled), np.cos(scaled)], axis=1)
    sig = np.pad(sig, [[0, 0], [0, channels % 2]])
    return jnp.asarray(sig, dtype=jnp.float32)  # (S, H)


# ---- in-kernel helpers --------------------------------------------------------
def _layer_norm(x, g, b):
    # MoEL-style LayerNorm: gamma * (x - mean) / (std + eps) + beta, unbiased std.
    n = x.shape[-1]
    mean = jnp.mean(x, axis=-1, keepdims=True)
    var = jnp.sum((x - mean) ** 2, axis=-1, keepdims=True) / (n - 1)
    std = jnp.sqrt(var)
    return g * (x - mean) / (std + LN_EPS) + b


def _mm(a, b):
    return jnp.dot(a.astype(MATMUL_DTYPE), b.astype(MATMUL_DTYPE),
                   preferred_element_type=jnp.float32)


def _bmm(eq, a, b):
    return jnp.einsum(eq, a.astype(MATMUL_DTYPE), b.astype(MATMUL_DTYPE),
                      preferred_element_type=jnp.float32)


# ---- fused encoder kernel (TB batch elements per grid step) -------------------
def encoder_kernel(enc_ref, emo_ref, mask_ref, timing_ref,
                   wproj_ref, wqkv_ref, wo_ref, w1_ref, w2_ref, vecs_ref,
                   o_ref):
    tb, s, e = enc_ref.shape
    hid = HIDDEN

    vecs = vecs_ref[...]                        # (N_VEC, VMAX) packed small vectors
    wproj = wproj_ref[...]                      # (2E, H)

    # ---- input projection (split wproj; no HBM concat / emotion broadcast) ----
    enc2 = enc_ref[...].reshape(tb * s, e)      # (TB*S, E)
    emo2 = emo_ref[...].reshape(tb, e)          # (TB, E)
    h_enc = _mm(enc2, wproj[:EMB_DIM, :])       # (TB*S, H)
    h_emo = _mm(emo2, wproj[EMB_DIM:, :])       # (TB, H)

    h = (h_enc.reshape(tb, s, hid)
         + h_emo[:, None, :]
         + timing_ref[...][None, :, :])         # (TB, S, H)

    neg = mask_ref[...] * (-1e18)               # (TB, 1, S) additive key mask, built once

    for l in range(NUM_LAYERS):
        base = 6 * l
        ln1g = vecs[base + 0:base + 1, :hid]
        ln1b = vecs[base + 1:base + 2, :hid]
        ln2g = vecs[base + 2:base + 3, :hid]
        ln2b = vecs[base + 3:base + 4, :hid]
        fb1  = vecs[base + 4:base + 5, :FILTER]
        fb2  = vecs[base + 5:base + 6, :hid]

        # --- multi-head self-attention block (pre-LN) ---
        xn = _layer_norm(h, ln1g, ln1b)                       # (TB, S, H)
        xn2 = xn.reshape(tb * s, hid)
        qkv = _mm(xn2, wqkv_ref[l])                           # (TB*S, 3H) fused Q|K|V
        q = (qkv[:, :KEY_DEPTH] * QUERY_SCALE).reshape(tb, s, KEY_DEPTH)
        k = qkv[:, KEY_DEPTH:2 * KEY_DEPTH].reshape(tb, s, KEY_DEPTH)
        v = qkv[:, 2 * KEY_DEPTH:].reshape(tb, s, VALUE_DEPTH)

        wo_l = wo_ref[l]                                      # (VD, H)
        attn = jnp.zeros((tb * s, hid), jnp.float32)
        for hh in range(NUM_HEADS):
            qs = q[:, :, hh * KDPH:(hh + 1) * KDPH]           # (TB, S, KDPH)
            ks = k[:, :, hh * KDPH:(hh + 1) * KDPH]
            vs = v[:, :, hh * VDPH:(hh + 1) * VDPH]
            logits = _bmm('bqd,bkd->bqk', qs, ks) + neg       # (TB, S, S)
            m = jnp.max(logits, axis=-1, keepdims=True)
            ex = jnp.exp(logits - m)
            p = ex * pl.reciprocal(jnp.sum(ex, axis=-1, keepdims=True), approx=True)
            ctx = _bmm('bqk,bkd->bqd', p, vs)                 # (TB, S, VDPH)
            # head-concat folded into the output projection: sum per-head contributions
            attn = attn + _mm(ctx.reshape(tb * s, VDPH),
                              wo_l[hh * VDPH:(hh + 1) * VDPH, :])
        h = h + attn.reshape(tb, s, hid)

        # --- positionwise feed-forward block (pre-LN) ---
        xn2f = _layer_norm(h, ln2g, ln2b).reshape(tb * s, hid)
        f = _mm(xn2f, w1_ref[l]) + fb1
        f = jnp.maximum(f, 0.0)
        f = _mm(f, w2_ref[l]) + fb2
        h = h + f.reshape(tb, s, hid)

    lnfg = vecs[6 * NUM_LAYERS + 0:6 * NUM_LAYERS + 1, :hid]
    lnfb = vecs[6 * NUM_LAYERS + 1:6 * NUM_LAYERS + 2, :hid]
    o_ref[...] = _layer_norm(h, lnfg, lnfb).astype(o_ref.dtype)


# ---- wrapper ------------------------------------------------------------------
def _full_spec(shape):
    nd = len(shape)
    return pl.BlockSpec(shape, lambda b, _nd=nd: (0,) * _nd)


def _pick_block_b(B):
    # Fold batch elements per grid step (amortize ~0.35 us/step overhead) but keep
    # two balanced parallel steps when possible so v7x's 2 TensorCores both get work.
    if B >= 2 and B % 2 == 0:
        return B // 2
    return B


def run_encoder(enc, emo, mask_f, timing, params):
    B, S, E = enc.shape
    TB = _pick_block_b(B)
    grid = (B // TB,)
    in_specs = [
        pl.BlockSpec((TB, S, E), lambda b: (b, 0, 0)),    # encoder_outputs block
        pl.BlockSpec((TB, 1, E), lambda b: (b, 0, 0)),    # emotion block
        pl.BlockSpec((TB, 1, S), lambda b: (b, 0, 0)),    # mask block
        _full_spec((S, HIDDEN)),                          # timing signal
        _full_spec((IN_DIM, HIDDEN)),                     # wproj (split inside the kernel)
        _full_spec((NUM_LAYERS, HIDDEN, QKV_DIM)),        # fused Wq|Wk|Wv
        _full_spec((NUM_LAYERS, VALUE_DEPTH, HIDDEN)),    # Wo
        _full_spec((NUM_LAYERS, HIDDEN, FILTER)),         # FFN W1
        _full_spec((NUM_LAYERS, FILTER, HIDDEN)),         # FFN W2
        _full_spec((N_VEC, VMAX)),                        # packed LN gammas/betas + biases
    ]
    return pl.pallas_call(
        encoder_kernel,
        out_shape=jax.ShapeDtypeStruct((B, S, HIDDEN), jnp.float32),
        grid=grid,
        in_specs=in_specs,
        out_specs=pl.BlockSpec((TB, S, HIDDEN), lambda b: (b, 0, 0)),
        compiler_params=pltpu.CompilerParams(dimension_semantics=("parallel",)),
    )(enc, emo, mask_f, timing,
      params["wproj"], params["wqkv"], params["wo"], params["w1"], params["w2"],
      params["vecs"])


@jax.jit
def _forward(emotion, encoder_outputs, mask_src, params):
    B, S, E = encoder_outputs.shape
    enc = encoder_outputs.astype(jnp.float32)
    emo = emotion.astype(jnp.float32)            # (B, 1, E); broadcast over S inside kernel
    mask_f = mask_src.astype(jnp.float32)        # (B, 1, S)
    timing = gen_timing_signal(S, HIDDEN)        # cached per (S, H); constant under jit
    return run_encoder(enc, emo, mask_f, timing, params)


def emotion_input_encoder(emotion, encoder_outputs, mask_src, params):
    """Forward pass of EmotionInputEncoder (emo_input='self_att')."""
    if EMO_INPUT != "self_att":
        raise ValueError("Only the 'self_att' branch is implemented.")
    return _forward(emotion, encoder_outputs, mask_src, params)


# ---- deterministic parameter init (kernel-packed layout) ----------------------
def init_params(key):
    ks = jax.random.split(key, 8)
    s = 0.05
    f32 = jnp.float32
    wq = jax.random.normal(ks[1], (NUM_LAYERS, HIDDEN, KEY_DEPTH), f32) * s
    wk = jax.random.normal(ks[2], (NUM_LAYERS, HIDDEN, KEY_DEPTH), f32) * s
    wv = jax.random.normal(ks[3], (NUM_LAYERS, HIDDEN, VALUE_DEPTH), f32) * s

    # pack the eight tiny per-layer vectors into one (N_VEC, VMAX) operand
    vecs = jnp.zeros((N_VEC, VMAX), f32)
    for l in range(NUM_LAYERS):
        vecs = vecs.at[6 * l + 0, :HIDDEN].set(1.0)   # ln1 gamma
        vecs = vecs.at[6 * l + 2, :HIDDEN].set(1.0)   # ln2 gamma
        # ln1/ln2 betas, FFN biases b1/b2 stay zero
    vecs = vecs.at[6 * NUM_LAYERS + 0, :HIDDEN].set(1.0)  # final LN gamma

    return {
        "wproj": jax.random.normal(ks[0], (IN_DIM, HIDDEN), f32) * s,
        "wqkv": jnp.concatenate([wq, wk, wv], axis=-1),        # (L, H, 3H)
        "wo": jax.random.normal(ks[4], (NUM_LAYERS, VALUE_DEPTH, HIDDEN), f32) * s,
        "w1": jax.random.normal(ks[5], (NUM_LAYERS, HIDDEN, FILTER), f32) * s,
        "w2": jax.random.normal(ks[6], (NUM_LAYERS, FILTER, HIDDEN), f32) * s,
        "vecs": vecs,
    }


if __name__ == "__main__":
    B, S = 2, 8
    key = jax.random.PRNGKey(0)
    k1, k2, k3 = jax.random.split(key, 3)

    encoder_outputs = jax.random.normal(k1, (B, S, EMB_DIM), jnp.float32)
    emotion = jax.random.normal(k2, (B, 1, EMB_DIM), jnp.float32)
    # last two key positions are padding
    mask_src = jnp.zeros((B, 1, S), dtype=bool).at[:, :, S - 2:].set(True)

    params = init_params(k3)

    out = emotion_input_encoder(emotion, encoder_outputs, mask_src, params)
    out = jax.block_until_ready(out)

    assert out.shape == (B, S, HIDDEN), out.shape
    assert bool(jnp.all(jnp.isfinite(out)))
    print("KERNEL_OK")
</pallas_src>

<mosaic_0001>
module attributes {stable_mosaic.version = 11 : i64} {
  func.func @encoder_kernel(%arg0: i32, %arg1: memref<1x8x32xf32, #tpu.memory_space<vmem>>, %arg2: memref<1x1x32xf32, #tpu.memory_space<vmem>>, %arg3: memref<1x1x8xf32, #tpu.memory_space<vmem>>, %arg4: memref<8x32xf32, #tpu.memory_space<vmem>>, %arg5: memref<64x32xf32, #tpu.memory_space<vmem>>, %arg6: memref<1x32x96xf32, #tpu.memory_space<vmem>>, %arg7: memref<1x32x32xf32, #tpu.memory_space<vmem>>, %arg8: memref<1x32x64xf32, #tpu.memory_space<vmem>>, %arg9: memref<1x64x32xf32, #tpu.memory_space<vmem>>, %arg10: memref<8x64xf32, #tpu.memory_space<vmem>>, %arg11: memref<1x8x32xf32, #tpu.memory_space<vmem>>) attributes {dimension_semantics = [#tpu.dimension_semantics<parallel>], iteration_bounds = array<i64: 2>, scalar_prefetch = 0 : i64, scratch_operands = 0 : i64, tpu.core_type = #tpu.core_type<tc>, window_params = [{transform_indices = @transform_0, window_bounds = array<i64: 1, 8, 32>}, {transform_indices = @transform_1, window_bounds = array<i64: 1, 1, 32>}, {transform_indices = @transform_2, window_bounds = array<i64: 1, 1, 8>}, {pipeline_mode = #tpu.pipeline_mode<synchronous>, transform_indices = @transform_3, window_bounds = array<i64: 8, 32>}, {pipeline_mode = #tpu.pipeline_mode<synchronous>, transform_indices = @transform_4, window_bounds = array<i64: 64, 32>}, {pipeline_mode = #tpu.pipeline_mode<synchronous>, transform_indices = @transform_5, window_bounds = array<i64: 1, 32, 96>}, {pipeline_mode = #tpu.pipeline_mode<synchronous>, transform_indices = @transform_6, window_bounds = array<i64: 1, 32, 32>}, {pipeline_mode = #tpu.pipeline_mode<synchronous>, transform_indices = @transform_7, window_bounds = array<i64: 1, 32, 64>}, {pipeline_mode = #tpu.pipeline_mode<synchronous>, transform_indices = @transform_8, window_bounds = array<i64: 1, 64, 32>}, {pipeline_mode = #tpu.pipeline_mode<synchronous>, transform_indices = @transform_9, window_bounds = array<i64: 8, 64>}, {transform_indices = @transform_10, window_bounds = array<i64: 1, 8, 32>}]} {
    %c0 = arith.constant 0 : index
    %c0_0 = arith.constant 0 : index
    %0 = vector.load %arg10[%c0, %c0_0] : memref<8x64xf32, #tpu.memory_space<vmem>>, vector<8x64xf32>
    %c0_1 = arith.constant 0 : index
    %c0_2 = arith.constant 0 : index
    %1 = vector.load %arg5[%c0_1, %c0_2] : memref<64x32xf32, #tpu.memory_space<vmem>>, vector<64x32xf32>
    %c0_3 = arith.constant 0 : index
    %c0_4 = arith.constant 0 : index
    %c0_5 = arith.constant 0 : index
    %2 = vector.load %arg1[%c0_3, %c0_4, %c0_5] : memref<1x8x32xf32, #tpu.memory_space<vmem>>, vector<1x8x32xf32>
    %3 = vector.shape_cast %2 : vector<1x8x32xf32> to vector<8x32xf32>
    %c0_6 = arith.constant 0 : index
    %c0_7 = arith.constant 0 : index
    %c0_8 = arith.constant 0 : index
    %4 = vector.load %arg2[%c0_6, %c0_7, %c0_8] : memref<1x1x32xf32, #tpu.memory_space<vmem>>, vector<1x1x32xf32>
    %5 = vector.shape_cast %4 : vector<1x1x32xf32> to vector<1x32xf32>
    %6 = vector.extract_strided_slice %1 {offsets = [0, 0], sizes = [32, 32], strides = [1, 1]} : vector<64x32xf32> to vector<32x32xf32>
    %cst = arith.constant dense<0.000000e+00> : vector<8x32xf32>
    %7 = tpu.matmul %3, %6, %cst {dimension_numbers = #tpu.dot_dimension_numbers<[1], [0], [0], [1], [0, 0, 1, 1], [], []>} : vector<8x32xf32>, vector<32x32xf32>, vector<8x32xf32> -> vector<8x32xf32>
    %8 = vector.extract_strided_slice %1 {offsets = [32, 0], sizes = [32, 32], strides = [1, 1]} : vector<64x32xf32> to vector<32x32xf32>
    %cst_9 = arith.constant dense<0.000000e+00> : vector<1x32xf32>
    %9 = tpu.matmul %5, %8, %cst_9 {dimension_numbers = #tpu.dot_dimension_numbers<[1], [0], [0], [1], [0, 0, 1, 1], [], []>} : vector<1x32xf32>, vector<32x32xf32>, vector<1x32xf32> -> vector<1x32xf32>
    %10 = vector.shape_cast %7 : vector<8x32xf32> to vector<1x8x32xf32>
    %11 = vector.shape_cast %9 : vector<1x32xf32> to vector<1x1x32xf32>
    %12 = vector.broadcast %11 : vector<1x1x32xf32> to vector<1x8x32xf32>
    %13 = arith.addf %10, %12 : vector<1x8x32xf32>
    %c0_10 = arith.constant 0 : index
    %c0_11 = arith.constant 0 : index
    %14 = vector.load %arg4[%c0_10, %c0_11] : memref<8x32xf32, #tpu.memory_space<vmem>>, vector<8x32xf32>
    %15 = vector.shape_cast %14 : vector<8x32xf32> to vector<1x8x32xf32>
    %16 = arith.addf %13, %15 : vector<1x8x32xf32>
    %c0_12 = arith.constant 0 : index
    %c0_13 = arith.constant 0 : index
    %c0_14 = arith.constant 0 : index
    %17 = vector.load %arg3[%c0_12, %c0_13, %c0_14] : memref<1x1x8xf32, #tpu.memory_space<vmem>>, vector<1x1x8xf32>
    %cst_15 = arith.constant -9.99999984E+17 : f32
    %18 = vector.broadcast %cst_15 : f32 to vector<1x1x8xf32>
    %19 = arith.mulf %17, %18 : vector<1x1x8xf32>
    %20 = vector.extract_strided_slice %0 {offsets = [0, 0], sizes = [1, 32], strides = [1, 1]} : vector<8x64xf32> to vector<1x32xf32>
    %21 = vector.extract_strided_slice %0 {offsets = [1, 0], sizes = [1, 32], strides = [1, 1]} : vector<8x64xf32> to vector<1x32xf32>
    %22 = vector.extract_strided_slice %0 {offsets = [2, 0], sizes = [1, 32], strides = [1, 1]} : vector<8x64xf32> to vector<1x32xf32>
    %23 = vector.extract_strided_slice %0 {offsets = [3, 0], sizes = [1, 32], strides = [1, 1]} : vector<8x64xf32> to vector<1x32xf32>
    %24 = vector.extract_strided_slice %0 {offsets = [4, 0], sizes = [1, 64], strides = [1, 1]} : vector<8x64xf32> to vector<1x64xf32>
    %25 = vector.extract_strided_slice %0 {offsets = [5, 0], sizes = [1, 32], strides = [1, 1]} : vector<8x64xf32> to vector<1x32xf32>
    %cst_16 = arith.constant dense<0.000000e+00> : vector<1x8xf32>
    %26 = vector.multi_reduction <add>, %16, %cst_16 [2] : vector<1x8x32xf32> to vector<1x8xf32>
    %27 = vector.shape_cast %26 : vector<1x8xf32> to vector<1x8x1xf32>
    %cst_17 = arith.constant 3.200000e+01 : f32
    %28 = vector.broadcast %cst_17 : f32 to vector<1x8x1xf32>
    %29 = arith.divf %27, %28 : vector<1x8x1xf32>
    %30 = vector.broadcast %29 : vector<1x8x1xf32> to vector<1x8x32xf32>
    %31 = arith.subf %16, %30 : vector<1x8x32xf32>
    %32 = arith.mulf %31, %31 : vector<1x8x32xf32>
    %cst_18 = arith.constant dense<0.000000e+00> : vector<1x8xf32>
    %33 = vector.multi_reduction <add>, %32, %cst_18 [2] : vector<1x8x32xf32> to vector<1x8xf32>
    %34 = vector.shape_cast %33 : vector<1x8xf32> to vector<1x8x1xf32>
    %cst_19 = arith.constant 3.100000e+01 : f32
    %35 = vector.broadcast %cst_19 : f32 to vector<1x8x1xf32>
    %36 = arith.divf %34, %35 : vector<1x8x1xf32>
    %37 = math.sqrt %36 : vector<1x8x1xf32>
    %38 = vector.broadcast %29 : vector<1x8x1xf32> to vector<1x8x32xf32>
    %39 = arith.subf %16, %38 : vector<1x8x32xf32>
    %40 = vector.shape_cast %20 : vector<1x32xf32> to vector<1x1x32xf32>
    %41 = vector.broadcast %40 : vector<1x1x32xf32> to vector<1x8x32xf32>
    %42 = arith.mulf %41, %39 : vector<1x8x32xf32>
    %cst_20 = arith.constant 9.99999997E-7 : f32
    %43 = vector.broadcast %cst_20 : f32 to vector<1x8x1xf32>
    %44 = arith.addf %37, %43 : vector<1x8x1xf32>
    %45 = vector.broadcast %44 : vector<1x8x1xf32> to vector<1x8x32xf32>
    %46 = arith.divf %42, %45 : vector<1x8x32xf32>
    %47 = vector.shape_cast %21 : vector<1x32xf32> to vector<1x1x32xf32>
    %48 = vector.broadcast %47 : vector<1x1x32xf32> to vector<1x8x32xf32>
    %49 = arith.addf %46, %48 : vector<1x8x32xf32>
    %50 = vector.shape_cast %49 : vector<1x8x32xf32> to vector<8x32xf32>
    %c0_21 = arith.constant 0 : index
    %c0_22 = arith.constant 0 : index
    %c0_23 = arith.constant 0 : index
    %51 = vector.load %arg6[%c0_21, %c0_22, %c0_23] : memref<1x32x96xf32, #tpu.memory_space<vmem>>, vector<1x32x96xf32>
    %52 = vector.shape_cast %51 : vector<1x32x96xf32> to vector<32x96xf32>
    %cst_24 = arith.constant dense<0.000000e+00> : vector<8x96xf32>
    %53 = tpu.matmul %50, %52, %cst_24 {dimension_numbers = #tpu.dot_dimension_numbers<[1], [0], [0], [1], [0, 0, 1, 1], [], []>} : vector<8x32xf32>, vector<32x96xf32>, vector<8x96xf32> -> vector<8x96xf32>
    %54 = vector.extract_strided_slice %53 {offsets = [0, 0], sizes = [8, 32], strides = [1, 1]} : vector<8x96xf32> to vector<8x32xf32>
    %cst_25 = arith.constant 0.353553385 : f32
    %55 = vector.broadcast %cst_25 : f32 to vector<8x32xf32>
    %56 = arith.mulf %54, %55 : vector<8x32xf32>
    %57 = vector.shape_cast %56 : vector<8x32xf32> to vector<1x8x32xf32>
    %58 = vector.extract_strided_slice %53 {offsets = [0, 32], sizes = [8, 32], strides = [1, 1]} : vector<8x96xf32> to vector<8x32xf32>
    %59 = vector.shape_cast %58 : vector<8x32xf32> to vector<1x8x32xf32>
    %60 = vector.extract_strided_slice %53 {offsets = [0, 64], sizes = [8, 32], strides = [1, 1]} : vector<8x96xf32> to vector<8x32xf32>
    %61 = vector.shape_cast %60 : vector<8x32xf32> to vector<1x8x32xf32>
    %c0_26 = arith.constant 0 : index
    %c0_27 = arith.constant 0 : index
    %c0_28 = arith.constant 0 : index
    %62 = vector.load %arg7[%c0_26, %c0_27, %c0_28] : memref<1x32x32xf32, #tpu.memory_space<vmem>>, vector<1x32x32xf32>
    %63 = vector.shape_cast %62 : vector<1x32x32xf32> to vector<32x32xf32>
    %cst_29 = arith.constant 0.000000e+00 : f32
    %64 = vector.broadcast %cst_29 : f32 to vector<8x32xf32>
    %65 = vector.extract_strided_slice %57 {offsets = [0, 0, 0], sizes = [1, 8, 8], strides = [1, 1, 1]} : vector<1x8x32xf32> to vector<1x8x8xf32>
    %66 = vector.extract_strided_slice %59 {offsets = [0, 0, 0], sizes = [1, 8, 8], strides = [1, 1, 1]} : vector<1x8x32xf32> to vector<1x8x8xf32>
    %67 = vector.extract_strided_slice %61 {offsets = [0, 0, 0], sizes = [1, 8, 8], strides = [1, 1, 1]} : vector<1x8x32xf32> to vector<1x8x8xf32>
    "tpu.trace_start"() <{level = 10 : i32, message = "bqd,bkd->bqk"}> : () -> ()
    %cst_30 = arith.constant dense<0.000000e+00> : vector<1x8x8xf32>
    %68 = tpu.matmul %65, %66, %cst_30 {dimension_numbers = #tpu.dot_dimension_numbers<[2], [2], [1], [1], [0, 0, 0, 1, 1, 1], [0], [0]>} : vector<1x8x8xf32>, vector<1x8x8xf32>, vector<1x8x8xf32> -> vector<1x8x8xf32>
    "tpu.trace_stop"() : () -> ()
    %69 = vector.broadcast %19 : vector<1x1x8xf32> to vector<1x8x8xf32>
    %70 = arith.addf %68, %69 : vector<1x8x8xf32>
    %cst_31 = arith.constant dense<0xFF800000> : vector<1x8xf32>
    %71 = vector.multi_reduction <maximumf>, %70, %cst_31 [2] : vector<1x8x8xf32> to vector<1x8xf32>
    %72 = vector.shape_cast %71 : vector<1x8xf32> to vector<1x8x1xf32>
    %73 = vector.broadcast %72 : vector<1x8x1xf32> to vector<1x8x8xf32>
    %74 = arith.subf %70, %73 : vector<1x8x8xf32>
    %75 = math.exp %74 : vector<1x8x8xf32>
    %cst_32 = arith.constant dense<0.000000e+00> : vector<1x8xf32>
    %76 = vector.multi_reduction <add>, %75, %cst_32 [2] : vector<1x8x8xf32> to vector<1x8xf32>
    %77 = vector.shape_cast %76 : vector<1x8xf32> to vector<1x8x1xf32>
    %78 = tpu.reciprocal %77 {approx = true} : vector<1x8x1xf32> -> vector<1x8x1xf32>
    %79 = vector.broadcast %78 : vector<1x8x1xf32> to vector<1x8x8xf32>
    %80 = arith.mulf %75, %79 : vector<1x8x8xf32>
    "tpu.trace_start"() <{level = 10 : i32, message = "bqk,bkd->bqd"}> : () -> ()
    %cst_33 = arith.constant dense<0.000000e+00> : vector<1x8x8xf32>
    %81 = tpu.matmul %80, %67, %cst_33 {dimension_numbers = #tpu.dot_dimension_numbers<[2], [1], [1], [2], [0, 0, 0, 1, 1, 2], [0], [0]>} : vector<1x8x8xf32>, vector<1x8x8xf32>, vector<1x8x8xf32> -> vector<1x8x8xf32>
    "tpu.trace_stop"() : () -> ()
    %82 = vector.shape_cast %81 : vector<1x8x8xf32> to vector<8x8xf32>
    %83 = vector.extract_strided_slice %63 {offsets = [0, 0], sizes = [8, 32], strides = [1, 1]} : vector<32x32xf32> to vector<8x32xf32>
    %cst_34 = arith.constant dense<0.000000e+00> : vector<8x32xf32>
    %84 = tpu.matmul %82, %83, %cst_34 {dimension_numbers = #tpu.dot_dimension_numbers<[1], [0], [0], [1], [0, 0, 1, 1], [], []>} : vector<8x8xf32>, vector<8x32xf32>, vector<8x32xf32> -> vector<8x32xf32>
    %85 = arith.addf %64, %84 : vector<8x32xf32>
    %86 = vector.extract_strided_slice %57 {offsets = [0, 0, 8], sizes = [1, 8, 8], strides = [1, 1, 1]} : vector<1x8x32xf32> to vector<1x8x8xf32>
    %87 = vector.extract_strided_slice %59 {offsets = [0, 0, 8], sizes = [1, 8, 8], strides = [1, 1, 1]} : vector<1x8x32xf32> to vector<1x8x8xf32>
    %88 = vector.extract_strided_slice %61 {offsets = [0, 0, 8], sizes = [1, 8, 8], strides = [1, 1, 1]} : vector<1x8x32xf32> to vector<1x8x8xf32>
    "tpu.trace_start"() <{level = 10 : i32, message = "bqd,bkd->bqk"}> : () -> ()
    %cst_35 = arith.constant dense<0.000000e+00> : vector<1x8x8xf32>
    %89 = tpu.matmul %86, %87, %cst_35 {dimension_numbers = #tpu.dot_dimension_numbers<[2], [2], [1], [1], [0, 0, 0, 1, 1, 1], [0], [0]>} : vector<1x8x8xf32>, vector<1x8x8xf32>, vector<1x8x8xf32> -> vector<1x8x8xf32>
    "tpu.trace_stop"() : () -> ()
    %90 = vector.broadcast %19 : vector<1x1x8xf32> to vector<1x8x8xf32>
    %91 = arith.addf %89, %90 : vector<1x8x8xf32>
    %cst_36 = arith.constant dense<0xFF800000> : vector<1x8xf32>
    %92 = vector.multi_reduction <maximumf>, %91, %cst_36 [2] : vector<1x8x8xf32> to vector<1x8xf32>
    %93 = vector.shape_cast %92 : vector<1x8xf32> to vector<1x8x1xf32>
    %94 = vector.broadcast %93 : vector<1x8x1xf32> to vector<1x8x8xf32>
    %95 = arith.subf %91, %94 : vector<1x8x8xf32>
    %96 = math.exp %95 : vector<1x8x8xf32>
    %cst_37 = arith.constant dense<0.000000e+00> : vector<1x8xf32>
    %97 = vector.multi_reduction <add>, %96, %cst_37 [2] : vector<1x8x8xf32> to vector<1x8xf32>
    %98 = vector.shape_cast %97 : vector<1x8xf32> to vector<1x8x1xf32>
    %99 = tpu.reciprocal %98 {approx = true} : vector<1x8x1xf32> -> vector<1x8x1xf32>
    %100 = vector.broadcast %99 : vector<1x8x1xf32> to vector<1x8x8xf32>
    %101 = arith.mulf %96, %100 : vector<1x8x8xf32>
    "tpu.trace_start"() <{level = 10 : i32, message = "bqk,bkd->bqd"}> : () -> ()
    %cst_38 = arith.constant dense<0.000000e+00> : vector<1x8x8xf32>
    %102 = tpu.matmul %101, %88, %cst_38 {dimension_numbers = #tpu.dot_dimension_numbers<[2], [1], [1], [2], [0, 0, 0, 1, 1, 2], [0], [0]>} : vector<1x8x8xf32>, vector<1x8x8xf32>, vector<1x8x8xf32> -> vector<1x8x8xf32>
    "tpu.trace_stop"() : () -> ()
    %103 = vector.shape_cast %102 : vector<1x8x8xf32> to vector<8x8xf32>
    %104 = vector.extract_strided_slice %63 {offsets = [8, 0], sizes = [8, 32], strides = [1, 1]} : vector<32x32xf32> to vector<8x32xf32>
    %cst_39 = arith.constant dense<0.000000e+00> : vector<8x32xf32>
    %105 = tpu.matmul %103, %104, %cst_39 {dimension_numbers = #tpu.dot_dimension_numbers<[1], [0], [0], [1], [0, 0, 1, 1], [], []>} : vector<8x8xf32>, vector<8x32xf32>, vector<8x32xf32> -> vector<8x32xf32>
    %106 = arith.addf %85, %105 : vector<8x32xf32>
    %107 = vector.extract_strided_slice %57 {offsets = [0, 0, 16], sizes = [1, 8, 8], strides = [1, 1, 1]} : vector<1x8x32xf32> to vector<1x8x8xf32>
    %108 = vector.extract_strided_slice %59 {offsets = [0, 0, 16], sizes = [1, 8, 8], strides = [1, 1, 1]} : vector<1x8x32xf32> to vector<1x8x8xf32>
    %109 = vector.extract_strided_slice %61 {offsets = [0, 0, 16], sizes = [1, 8, 8], strides = [1, 1, 1]} : vector<1x8x32xf32> to vector<1x8x8xf32>
    "tpu.trace_start"() <{level = 10 : i32, message = "bqd,bkd->bqk"}> : () -> ()
    %cst_40 = arith.constant dense<0.000000e+00> : vector<1x8x8xf32>
    %110 = tpu.matmul %107, %108, %cst_40 {dimension_numbers = #tpu.dot_dimension_numbers<[2], [2], [1], [1], [0, 0, 0, 1, 1, 1], [0], [0]>} : vector<1x8x8xf32>, vector<1x8x8xf32>, vector<1x8x8xf32> -> vector<1x8x8xf32>
    "tpu.trace_stop"() : () -> ()
    %111 = vector.broadcast %19 : vector<1x1x8xf32> to vector<1x8x8xf32>
    %112 = arith.addf %110, %111 : vector<1x8x8xf32>
    %cst_41 = arith.constant dense<0xFF800000> : vector<1x8xf32>
    %113 = vector.multi_reduction <maximumf>, %112, %cst_41 [2] : vector<1x8x8xf32> to vector<1x8xf32>
    %114 = vector.shape_cast %113 : vector<1x8xf32> to vector<1x8x1xf32>
    %115 = vector.broadcast %114 : vector<1x8x1xf32> to vector<1x8x8xf32>
    %116 = arith.subf %112, %115 : vector<1x8x8xf32>
    %117 = math.exp %116 : vector<1x8x8xf32>
    %cst_42 = arith.constant dense<0.000000e+00> : vector<1x8xf32>
    %118 = vector.multi_reduction <add>, %117, %cst_42 [2] : vector<1x8x8xf32> to vector<1x8xf32>
    %119 = vector.shape_cast %118 : vector<1x8xf32> to vector<1x8x1xf32>
    %120 = tpu.reciprocal %119 {approx = true} : vector<1x8x1xf32> -> vector<1x8x1xf32>
    %121 = vector.broadcast %120 : vector<1x8x1xf32> to vector<1x8x8xf32>
    %122 = arith.mulf %117, %121 : vector<1x8x8xf32>
    "tpu.trace_start"() <{level = 10 : i32, message = "bqk,bkd->bqd"}> : () -> ()
    %cst_43 = arith.constant dense<0.000000e+00> : vector<1x8x8xf32>
    %123 = tpu.matmul %122, %109, %cst_43 {dimension_numbers = #tpu.dot_dimension_numbers<[2], [1], [1], [2], [0, 0, 0, 1, 1, 2], [0], [0]>} : vector<1x8x8xf32>, vector<1x8x8xf32>, vector<1x8x8xf32> -> vector<1x8x8xf32>
    "tpu.trace_stop"() : () -> ()
    %124 = vector.shape_cast %123 : vector<1x8x8xf32> to vector<8x8xf32>
    %125 = vector.extract_strided_slice %63 {offsets = [16, 0], sizes = [8, 32], strides = [1, 1]} : vector<32x32xf32> to vector<8x32xf32>
    %cst_44 = arith.constant dense<0.000000e+00> : vector<8x32xf32>
    %126 = tpu.matmul %124, %125, %cst_44 {dimension_numbers = #tpu.dot_dimension_numbers<[1], [0], [0], [1], [0, 0, 1, 1], [], []>} : vector<8x8xf32>, vector<8x32xf32>, vector<8x32xf32> -> vector<8x32xf32>
    %127 = arith.addf %106, %126 : vector<8x32xf32>
    %128 = vector.extract_strided_slice %57 {offsets = [0, 0, 24], sizes = [1, 8, 8], strides = [1, 1, 1]} : vector<1x8x32xf32> to vector<1x8x8xf32>
    %129 = vector.extract_strided_slice %59 {offsets = [0, 0, 24], sizes = [1, 8, 8], strides = [1, 1, 1]} : vector<1x8x32xf32> to vector<1x8x8xf32>
    %130 = vector.extract_strided_slice %61 {offsets = [0, 0, 24], sizes = [1, 8, 8], strides = [1, 1, 1]} : vector<1x8x32xf32> to vector<1x8x8xf32>
    "tpu.trace_start"() <{level = 10 : i32, message = "bqd,bkd->bqk"}> : () -> ()
    %cst_45 = arith.constant dense<0.000000e+00> : vector<1x8x8xf32>
    %131 = tpu.matmul %128, %129, %cst_45 {dimension_numbers = #tpu.dot_dimension_numbers<[2], [2], [1], [1], [0, 0, 0, 1, 1, 1], [0], [0]>} : vector<1x8x8xf32>, vector<1x8x8xf32>, vector<1x8x8xf32> -> vector<1x8x8xf32>
    "tpu.trace_stop"() : () -> ()
    %132 = vector.broadcast %19 : vector<1x1x8xf32> to vector<1x8x8xf32>
    %133 = arith.addf %131, %132 : vector<1x8x8xf32>
    %cst_46 = arith.constant dense<0xFF800000> : vector<1x8xf32>
    %134 = vector.multi_reduction <maximumf>, %133, %cst_46 [2] : vector<1x8x8xf32> to vector<1x8xf32>
    %135 = vector.shape_cast %134 : vector<1x8xf32> to vector<1x8x1xf32>
    %136 = vector.broadcast %135 : vector<1x8x1xf32> to vector<1x8x8xf32>
    %137 = arith.subf %133, %136 : vector<1x8x8xf32>
    %138 = math.exp %137 : vector<1x8x8xf32>
    %cst_47 = arith.constant dense<0.000000e+00> : vector<1x8xf32>
    %139 = vector.multi_reduction <add>, %138, %cst_47 [2] : vector<1x8x8xf32> to vector<1x8xf32>
    %140 = vector.shape_cast %139 : vector<1x8xf32> to vector<1x8x1xf32>
    %141 = tpu.reciprocal %140 {approx = true} : vector<1x8x1xf32> -> vector<1x8x1xf32>
    %142 = vector.broadcast %141 : vector<1x8x1xf32> to vector<1x8x8xf32>
    %143 = arith.mulf %138, %142 : vector<1x8x8xf32>
    "tpu.trace_start"() <{level = 10 : i32, message = "bqk,bkd->bqd"}> : () -> ()
    %cst_48 = arith.constant dense<0.000000e+00> : vector<1x8x8xf32>
    %144 = tpu.matmul %143, %130, %cst_48 {dimension_numbers = #tpu.dot_dimension_numbers<[2], [1], [1], [2], [0, 0, 0, 1, 1, 2], [0], [0]>} : vector<1x8x8xf32>, vector<1x8x8xf32>, vector<1x8x8xf32> -> vector<1x8x8xf32>
    "tpu.trace_stop"() : () -> ()
    %145 = vector.shape_cast %144 : vector<1x8x8xf32> to vector<8x8xf32>
    %146 = vector.extract_strided_slice %63 {offsets = [24, 0], sizes = [8, 32], strides = [1, 1]} : vector<32x32xf32> to vector<8x32xf32>
    %cst_49 = arith.constant dense<0.000000e+00> : vector<8x32xf32>
    %147 = tpu.matmul %145, %146, %cst_49 {dimension_numbers = #tpu.dot_dimension_numbers<[1], [0], [0], [1], [0, 0, 1, 1], [], []>} : vector<8x8xf32>, vector<8x32xf32>, vector<8x32xf32> -> vector<8x32xf32>
    %148 = arith.addf %127, %147 : vector<8x32xf32>
    %149 = vector.shape_cast %148 : vector<8x32xf32> to vector<1x8x32xf32>
    %150 = arith.addf %16, %149 : vector<1x8x32xf32>
    %cst_50 = arith.constant dense<0.000000e+00> : vector<1x8xf32>
    %151 = vector.multi_reduction <add>, %150, %cst_50 [2] : vector<1x8x32xf32> to vector<1x8xf32>
    %152 = vector.shape_cast %151 : vector<1x8xf32> to vector<1x8x1xf32>
    %cst_51 = arith.constant 3.200000e+01 : f32
    %153 = vector.broadcast %cst_51 : f32 to vector<1x8x1xf32>
    %154 = arith.divf %152, %153 : vector<1x8x1xf32>
    %155 = vector.broadcast %154 : vector<1x8x1xf32> to vector<1x8x32xf32>
    %156 = arith.subf %150, %155 : vector<1x8x32xf32>
    %157 = arith.mulf %156, %156 : vector<1x8x32xf32>
    %cst_52 = arith.constant dense<0.000000e+00> : vector<1x8xf32>
    %158 = vector.multi_reduction <add>, %157, %cst_52 [2] : vector<1x8x32xf32> to vector<1x8xf32>
    %159 = vector.shape_cast %158 : vector<1x8xf32> to vector<1x8x1xf32>
    %cst_53 = arith.constant 3.100000e+01 : f32
    %160 = vector.broadcast %cst_53 : f32 to vector<1x8x1xf32>
    %161 = arith.divf %159, %160 : vector<1x8x1xf32>
    %162 = math.sqrt %161 : vector<1x8x1xf32>
    %163 = vector.broadcast %154 : vector<1x8x1xf32> to vector<1x8x32xf32>
    %164 = arith.subf %150, %163 : vector<1x8x32xf32>
    %165 = vector.shape_cast %22 : vector<1x32xf32> to vector<1x1x32xf32>
    %166 = vector.broadcast %165 : vector<1x1x32xf32> to vector<1x8x32xf32>
    %167 = arith.mulf %166, %164 : vector<1x8x32xf32>
    %cst_54 = arith.constant 9.99999997E-7 : f32
    %168 = vector.broadcast %cst_54 : f32 to vector<1x8x1xf32>
    %169 = arith.addf %162, %168 : vector<1x8x1xf32>
    %170 = vector.broadcast %169 : vector<1x8x1xf32> to vector<1x8x32xf32>
    %171 = arith.divf %167, %170 : vector<1x8x32xf32>
    %172 = vector.shape_cast %23 : vector<1x32xf32> to vector<1x1x32xf32>
    %173 = vector.broadcast %172 : vector<1x1x32xf32> to vector<1x8x32xf32>
    %174 = arith.addf %171, %173 : vector<1x8x32xf32>
    %175 = vector.shape_cast %174 : vector<1x8x32xf32> to vector<8x32xf32>
    %c0_55 = arith.constant 0 : index
    %c0_56 = arith.constant 0 : index
    %c0_57 = arith.constant 0 : index
    %176 = vector.load %arg8[%c0_55, %c0_56, %c0_57] : memref<1x32x64xf32, #tpu.memory_space<vmem>>, vector<1x32x64xf32>
    %177 = vector.shape_cast %176 : vector<1x32x64xf32> to vector<32x64xf32>
    %cst_58 = arith.constant dense<0.000000e+00> : vector<8x64xf32>
    %178 = tpu.matmul %175, %177, %cst_58 {dimension_numbers = #tpu.dot_dimension_numbers<[1], [0], [0], [1], [0, 0, 1, 1], [], []>} : vector<8x32xf32>, vector<32x64xf32>, vector<8x64xf32> -> vector<8x64xf32>
    %179 = vector.broadcast %24 : vector<1x64xf32> to vector<8x64xf32>
    %180 = arith.addf %178, %179 : vector<8x64xf32>
    %cst_59 = arith.constant 0.000000e+00 : f32
    %181 = vector.broadcast %cst_59 : f32 to vector<8x64xf32>
    %182 = arith.maximumf %180, %181 : vector<8x64xf32>
    %c0_60 = arith.constant 0 : index
    %c0_61 = arith.constant 0 : index
    %c0_62 = arith.constant 0 : index
    %183 = vector.load %arg9[%c0_60, %c0_61, %c0_62] : memref<1x64x32xf32, #tpu.memory_space<vmem>>, vector<1x64x32xf32>
    %184 = vector.shape_cast %183 : vector<1x64x32xf32> to vector<64x32xf32>
    %cst_63 = arith.constant dense<0.000000e+00> : vector<8x32xf32>
    %185 = tpu.matmul %182, %184, %cst_63 {dimension_numbers = #tpu.dot_dimension_numbers<[1], [0], [0], [1], [0, 0, 1, 1], [], []>} : vector<8x64xf32>, vector<64x32xf32>, vector<8x32xf32> -> vector<8x32xf32>
    %186 = vector.broadcast %25 : vector<1x32xf32> to vector<8x32xf32>
    %187 = arith.addf %185, %186 : vector<8x32xf32>
    %188 = vector.shape_cast %187 : vector<8x32xf32> to vector<1x8x32xf32>
    %189 = arith.addf %150, %188 : vector<1x8x32xf32>
    %190 = vector.extract_strided_slice %0 {offsets = [6, 0], sizes = [1, 32], strides = [1, 1]} : vector<8x64xf32> to vector<1x32xf32>
    %191 = vector.extract_strided_slice %0 {offsets = [7, 0], sizes = [1, 32], strides = [1, 1]} : vector<8x64xf32> to vector<1x32xf32>
    %cst_64 = arith.constant dense<0.000000e+00> : vector<1x8xf32>
    %192 = vector.multi_reduction <add>, %189, %cst_64 [2] : vector<1x8x32xf32> to vector<1x8xf32>
    %193 = vector.shape_cast %192 : vector<1x8xf32> to vector<1x8x1xf32>
    %cst_65 = arith.constant 3.200000e+01 : f32
    %194 = vector.broadcast %cst_65 : f32 to vector<1x8x1xf32>
    %195 = arith.divf %193, %194 : vector<1x8x1xf32>
    %196 = vector.broadcast %195 : vector<1x8x1xf32> to vector<1x8x32xf32>
    %197 = arith.subf %189, %196 : vector<1x8x32xf32>
    %198 = arith.mulf %197, %197 : vector<1x8x32xf32>
    %cst_66 = arith.constant dense<0.000000e+00> : vector<1x8xf32>
    %199 = vector.multi_reduction <add>, %198, %cst_66 [2] : vector<1x8x32xf32> to vector<1x8xf32>
    %200 = vector.shape_cast %199 : vector<1x8xf32> to vector<1x8x1xf32>
    %cst_67 = arith.constant 3.100000e+01 : f32
    %201 = vector.broadcast %cst_67 : f32 to vector<1x8x1xf32>
    %202 = arith.divf %200, %201 : vector<1x8x1xf32>
    %203 = math.sqrt %202 : vector<1x8x1xf32>
    %204 = vector.broadcast %195 : vector<1x8x1xf32> to vector<1x8x32xf32>
    %205 = arith.subf %189, %204 : vector<1x8x32xf32>
    %206 = vector.shape_cast %190 : vector<1x32xf32> to vector<1x1x32xf32>
    %207 = vector.broadcast %206 : vector<1x1x32xf32> to vector<1x8x32xf32>
    %208 = arith.mulf %207, %205 : vector<1x8x32xf32>
    %cst_68 = arith.constant 9.99999997E-7 : f32
    %209 = vector.broadcast %cst_68 : f32 to vector<1x8x1xf32>
    %210 = arith.addf %203, %209 : vector<1x8x1xf32>
    %211 = vector.broadcast %210 : vector<1x8x1xf32> to vector<1x8x32xf32>
    %212 = arith.divf %208, %211 : vector<1x8x32xf32>
    %213 = vector.shape_cast %191 : vector<1x32xf32> to vector<1x1x32xf32>
    %214 = vector.broadcast %213 : vector<1x1x32xf32> to vector<1x8x32xf32>
    %215 = arith.addf %212, %214 : vector<1x8x32xf32>
    %c0_69 = arith.constant 0 : index
    %c0_70 = arith.constant 0 : index
    %c0_71 = arith.constant 0 : index
    %216 = vector.load %arg11[%c0_69, %c0_70, %c0_71] : memref<1x8x32xf32, #tpu.memory_space<vmem>>, vector<1x8x32xf32>
    tpu.vector_store %arg11[%c0_69, %c0_70, %c0_71], %215 {strides = array<i32>} : memref<1x8x32xf32, #tpu.memory_space<vmem>>, vector<1x8x32xf32>,
    return
  }
  func.func @transform_0(%arg0: i32) -> (i32, i32, i32) {
    %c0_i32 = arith.constant 0 : i32
    %c0_i32_0 = arith.constant 0 : i32
    %c0_i32_1 = arith.constant 0 : i32
    return %arg0, %c0_i32, %c0_i32_0 : i32, i32, i32
  }
  func.func @transform_1(%arg0: i32) -> (i32, i32, i32) {
    %c0_i32 = arith.constant 0 : i32
    %c0_i32_0 = arith.constant 0 : i32
    %c0_i32_1 = arith.constant 0 : i32
    return %arg0, %c0_i32, %c0_i32_0 : i32, i32, i32
  }
  func.func @transform_2(%arg0: i32) -> (i32, i32, i32) {
    %c0_i32 = arith.constant 0 : i32
    %c0_i32_0 = arith.constant 0 : i32
    %c0_i32_1 = arith.constant 0 : i32
    return %arg0, %c0_i32, %c0_i32_0 : i32, i32, i32
  }
  func.func @transform_3(%arg0: i32) -> (i32, i32) {
    %c0_i32 = arith.constant 0 : i32
    %c0_i32_0 = arith.constant 0 : i32
    %c0_i32_1 = arith.constant 0 : i32
    return %c0_i32, %c0_i32_0 : i32, i32
  }
  func.func @transform_4(%arg0: i32) -> (i32, i32) {
    %c0_i32 = arith.constant 0 : i32
    %c0_i32_0 = arith.constant 0 : i32
    %c0_i32_1 = arith.constant 0 : i32
    return %c0_i32, %c0_i32_0 : i32, i32
  }
  func.func @transform_5(%arg0: i32) -> (i32, i32, i32) {
    %c0_i32 = arith.constant 0 : i32
    %c0_i32_0 = arith.constant 0 : i32
    %c0_i32_1 = arith.constant 0 : i32
    %c0_i32_2 = arith.constant 0 : i32
    return %c0_i32, %c0_i32_0, %c0_i32_1 : i32, i32, i32
  }
  func.func @transform_6(%arg0: i32) -> (i32, i32, i32) {
    %c0_i32 = arith.constant 0 : i32
    %c0_i32_0 = arith.constant 0 : i32
    %c0_i32_1 = arith.constant 0 : i32
    %c0_i32_2 = arith.constant 0 : i32
    return %c0_i32, %c0_i32_0, %c0_i32_1 : i32, i32, i32
  }
  func.func @transform_7(%arg0: i32) -> (i32, i32, i32) {
    %c0_i32 = arith.constant 0 : i32
    %c0_i32_0 = arith.constant 0 : i32
    %c0_i32_1 = arith.constant 0 : i32
    %c0_i32_2 = arith.constant 0 : i32
    return %c0_i32, %c0_i32_0, %c0_i32_1 : i32, i32, i32
  }
  func.func @transform_8(%arg0: i32) -> (i32, i32, i32) {
    %c0_i32 = arith.constant 0 : i32
    %c0_i32_0 = arith.constant 0 : i32
    %c0_i32_1 = arith.constant 0 : i32
    %c0_i32_2 = arith.constant 0 : i32
    return %c0_i32, %c0_i32_0, %c0_i32_1 : i32, i32, i32
  }
  func.func @transform_9(%arg0: i32) -> (i32, i32) {
    %c0_i32 = arith.constant 0 : i32
    %c0_i32_0 = arith.constant 0 : i32
    %c0_i32_1 = arith.constant 0 : i32
    return %c0_i32, %c0_i32_0 : i32, i32
  }
  func.func @transform_10(%arg0: i32) -> (i32, i32, i32) {
    %c0_i32 = arith.constant 0 : i32
    %c0_i32_0 = arith.constant 0 : i32
    %c0_i32_1 = arith.constant 0 : i32
    return %arg0, %c0_i32, %c0_i32_0 : i32, i32, i32
  }
}

</mosaic_0001>

<llo_original>
// kernel: _forward.1
$region0: #{_forward.1}
  #allocation0 [shape = 'u32[]', space=smem, size = 0x4, offset = 0x4, fixed_abs, tag = 'smem constant byte address 0x4 - core index']
  #allocation1 [shape = 'u32[144,128]{1,0:T(1,128)}', space=vmem, size = 0x12000, scoped, tag = 'internal scratch']
  %s0 = inlined_call_operand.vmem [shape: f32[2,8,32], index: 0, kind: input, shape index: {}]
  %s1 = inlined_call_operand.vmem [shape: f32[2,1,32], index: 1, kind: input, shape index: {}]
  %s2 = inlined_call_operand.vmem [shape: f32[2,1,8], index: 2, kind: input, shape index: {}]
  %s3 = inlined_call_operand.vmem [shape: f32[8,32], index: 3, kind: input, shape index: {}]
  %s4 = inlined_call_operand.vmem [shape: f32[64,32], index: 4, kind: input, shape index: {}]
  %s5 = inlined_call_operand.vmem [shape: f32[1,32,96], index: 5, kind: input, shape index: {}]
  %s6 = inlined_call_operand.vmem [shape: f32[1,32,32], index: 6, kind: input, shape index: {}]
  %s7 = inlined_call_operand.vmem [shape: f32[1,32,64], index: 7, kind: input, shape index: {}]
  %s8 = inlined_call_operand.vmem [shape: f32[1,64,32], index: 8, kind: input, shape index: {}]
  %s9 = inlined_call_operand.vmem [shape: f32[8,64], index: 9, kind: input, shape index: {}]
  %s10 = inlined_call_operand.hbm [shape: f32[2,8,32], index: 10, kind: output, shape index: {}]
  %s11 = sld [smem:[#allocation0]]
  $region73: #{_forward.1} parent=0
    _
  %s13 = ssub.s32 1, %s11
  %s14 = scalar_select 0, %s13, %s11
  $region1: #{_forward.1} parent=0
    #allocation2 [shape = 'u8[8192]{0}', space=vmem, size = 0x2000, scoped, tag = 'output window, operand 0']
    #allocation3 [shape = 's32[2]{0}', space=sflag, size = 0x8, scoped, tag = 'scoped memory for _forward.1']
    %15 = vsyncpa [#allocation3], 0
    %s16 = scalar_lea.sflag [#allocation3], 1
    %17 = vsyncpa %s16, 0
    loop: start=0, step=1, limit=4
    $region2: #{_forward.1} parent=1 // loop_pre_header
      _
    $region3: #{_forward.1} parent=1 // loop_header
      %s19 = sphi 0, %s23
      %p20 = scmp.ge.s32.totalorder %s19, 4
      %s29 = sphi 0, %s31
      %s32 = sphi 0, %s29
      %s33 = sphi 0, %s32
      %s49 = sphi 0, %s33
      %s55 = sphi 0, %s57
      %s58 = sphi 0, %s55
      %s59 = sphi 0, %s58
      %s75 = sphi 0, %s59
      %s81 = sphi 0, %s83
      %s84 = sphi 0, %s81
      %s85 = sphi 0, %s84
      %s101 = sphi 0, %s85
      %s105 = sphi 0, %s105
      %s107 = sphi 0, %s105
      %s108 = sphi 0, %s107
      %s122 = sphi 0, %s108
      %s126 = sphi 0, %s126
      %s128 = sphi 0, %s126
      %s129 = sphi 0, %s128
      %s143 = sphi 0, %s129
      %s147 = sphi 0, %s147
      %s149 = sphi 0, %s147
      %s150 = sphi 0, %s149
      %s164 = sphi 0, %s150
      %s168 = sphi 0, %s168
      %s170 = sphi 0, %s168
      %s171 = sphi 0, %s170
      %s185 = sphi 0, %s171
      %s189 = sphi 0, %s189
      %s191 = sphi 0, %s189
      %s192 = sphi 0, %s191
      %s206 = sphi 0, %s192
      %s210 = sphi 0, %s210
      %s212 = sphi 0, %s210
      %s213 = sphi 0, %s212
      %s227 = sphi 0, %s213
      %s231 = sphi 0, %s231
      %s233 = sphi 0, %s231
      %s234 = sphi 0, %s233
      %s248 = sphi 0, %s234
      %s254 = sphi 0, %s256
      %s257 = sphi 0, %s254
      %s258 = sphi 0, %s257
      %s274 = sphi 0, %s258
    $region4: #{_forward.1} parent=1 // loop_header_branch
      %22 = sbr.rel (%p20) target = $region8
    $region5: #{_forward.1} parent=1 // loop_body
      %s24 = ssub.s32 %s19, 1
      %s25 = ssub.s32 %s19, 2
      %s26 = sadd.s32 %s19, 1
      %s27 = ssub.s32 %s19, %s26
      %p28 = scmp.eq.s32.totalorder %s27, 0
      %s30 = sadd.s32 %s29, 1
      %s31 = scalar_select %p28, %s29, %s30
      %p34 = pneg %p28
      %p35 = scmp.eq.s32.totalorder %s19, 1
      %p36 = por %p34, %p35
      %p37 = scmp.ne.s32.totalorder %s29, %s32
      %p38 = scmp.eq.s32.totalorder %s19, 0
      %p39 = por %p37, %p38
      %p40 = scmp.ne.s32.totalorder %s29, %s32
      %p41 = scmp.eq.s32.totalorder %s24, 1
      %p42 = por %p40, %p41
      %p43 = scmp.ne.s32.totalorder %s32, %s33
      %p44 = scmp.eq.s32.totalorder %s24, 0
      %p45 = por %p43, %p44
      %p46 = scmp.ne.s32.totalorder %s32, %s33
      %p47 = scmp.eq.s32.totalorder %s25, 1
      %p48 = por %p46, %p47
      %p50 = scmp.ne.s32.totalorder %s33, %s49
      %p51 = scmp.eq.s32.totalorder %s25, 0
      %p52 = por %p50, %p51
      %s53 = ssub.s32 %s19, %s26
      %p54 = scmp.eq.s32.totalorder %s53, 0
      %s56 = sadd.s32 %s55, 1
      %s57 = scalar_select %p54, %s55, %s56
      %p60 = pneg %p54
      %p61 = scmp.eq.s32.totalorder %s19, 1
      %p62 = por %p60, %p61
      %p63 = scmp.ne.s32.totalorder %s55, %s58
      %p64 = scmp.eq.s32.totalorder %s19, 0
      %p65 = por %p63, %p64
      %p66 = scmp.ne.s32.totalorder %s55, %s58
      %p67 = scmp.eq.s32.totalorder %s24, 1
      %p68 = por %p66, %p67
      %p69 = scmp.ne.s32.totalorder %s58, %s59
      %p70 = scmp.eq.s32.totalorder %s24, 0
      %p71 = por %p69, %p70
      %p72 = scmp.ne.s32.totalorder %s58, %s59
      %p73 = scmp.eq.s32.totalorder %s25, 1
      %p74 = por %p72, %p73
      %p76 = scmp.ne.s32.totalorder %s59, %s75
      %p77 = scmp.eq.s32.totalorder %s25, 0
      %p78 = por %p76, %p77
      %s79 = ssub.s32 %s19, %s26
      %p80 = scmp.eq.s32.totalorder %s79, 0
      %s82 = sadd.s32 %s81, 1
      %s83 = scalar_select %p80, %s81, %s82
      %p86 = pneg %p80
      %p87 = scmp.eq.s32.totalorder %s19, 1
      %p88 = por %p86, %p87
      %p89 = scmp.ne.s32.totalorder %s81, %s84
      %p90 = scmp.eq.s32.totalorder %s19, 0
      %p91 = por %p89, %p90
      %p92 = scmp.ne.s32.totalorder %s81, %s84
      %p93 = scmp.eq.s32.totalorder %s24, 1
      %p94 = por %p92, %p93
      %p95 = scmp.ne.s32.totalorder %s84, %s85
      %p96 = scmp.eq.s32.totalorder %s24, 0
      %p97 = por %p95, %p96
      %p98 = scmp.ne.s32.totalorder %s84, %s85
      %p99 = scmp.eq.s32.totalorder %s25, 1
      %p100 = por %p98, %p99
      %p102 = scmp.ne.s32.totalorder %s85, %s101
      %p103 = scmp.eq.s32.totalorder %s25, 0
      %p104 = por %p102, %p103
      %s106 = sadd.s32 %s105, 1
      %p109 = scmp.eq.s32.totalorder %s19, 1
      %p110 = scmp.ne.s32.totalorder %s105, %s107
      %p111 = scmp.eq.s32.totalorder %s19, 0
      %p112 = por %p110, %p111
      %p113 = scmp.ne.s32.totalorder %s105, %s107
      %p114 = scmp.eq.s32.totalorder %s24, 1
      %p115 = por %p113, %p114
      %p116 = scmp.ne.s32.totalorder %s107, %s108
      %p117 = scmp.eq.s32.totalorder %s24, 0
      %p118 = por %p116, %p117
      %p119 = scmp.ne.s32.totalorder %s107, %s108
      %p120 = scmp.eq.s32.totalorder %s25, 1
      %p121 = por %p119, %p120
      %p123 = scmp.ne.s32.totalorder %s108, %s122
      %p124 = scmp.eq.s32.totalorder %s25, 0
      %p125 = por %p123, %p124
      %s127 = sadd.s32 %s126, 1
      %p130 = scmp.eq.s32.totalorder %s19, 1
      %p131 = scmp.ne.s32.totalorder %s126, %s128
      %p132 = scmp.eq.s32.totalorder %s19, 0
      %p133 = por %p131, %p132
      %p134 = scmp.ne.s32.totalorder %s126, %s128
      %p135 = scmp.eq.s32.totalorder %s24, 1
      %p136 = por %p134, %p135
      %p137 = scmp.ne.s32.totalorder %s128, %s129
      %p138 = scmp.eq.s32.totalorder %s24, 0
      %p139 = por %p137, %p138
      %p140 = scmp.ne.s32.totalorder %s128, %s129
      %p141 = scmp.eq.s32.totalorder %s25, 1
      %p142 = por %p140, %p141
      %p144 = scmp.ne.s32.totalorder %s129, %s143
      %p145 = scmp.eq.s32.totalorder %s25, 0
      %p146 = por %p144, %p145
      %s148 = sadd.s32 %s147, 1
      %p151 = scmp.eq.s32.totalorder %s19, 1
      %p152 = scmp.ne.s32.totalorder %s147, %s149
      %p153 = scmp.eq.s32.totalorder %s19, 0
      %p154 = por %p152, %p153
      %p155 = scmp.ne.s32.totalorder %s147, %s149
      %p156 = scmp.eq.s32.totalorder %s24, 1
      %p157 = por %p155, %p156
      %p158 = scmp.ne.s32.totalorder %s149, %s150
      %p159 = scmp.eq.s32.totalorder %s24, 0
      %p160 = por %p158, %p159
      %p161 = scmp.ne.s32.totalorder %s149, %s150
      %p162 = scmp.eq.s32.totalorder %s25, 1
      %p163 = por %p161, %p162
      %p165 = scmp.ne.s32.totalorder %s150, %s164
      %p166 = scmp.eq.s32.totalorder %s25, 0
      %p167 = por %p165, %p166
      %s169 = sadd.s32 %s168, 1
      %p172 = scmp.eq.s32.totalorder %s19, 1
      %p173 = scmp.ne.s32.totalorder %s168, %s170
      %p174 = scmp.eq.s32.totalorder %s19, 0
      %p175 = por %p173, %p174
      %p176 = scmp.ne.s32.totalorder %s168, %s170
      %p177 = scmp.eq.s32.totalorder %s24, 1
      %p178 = por %p176, %p177
      %p179 = scmp.ne.s32.totalorder %s170, %s171
      %p180 = scmp.eq.s32.totalorder %s24, 0
      %p181 = por %p179, %p180
      %p182 = scmp.ne.s32.totalorder %s170, %s171
      %p183 = scmp.eq.s32.totalorder %s25, 1
      %p184 = por %p182, %p183
      %p186 = scmp.ne.s32.totalorder %s171, %s185
      %p187 = scmp.eq.s32.totalorder %s25, 0
      %p188 = por %p186, %p187
      %s190 = sadd.s32 %s189, 1
      %p193 = scmp.eq.s32.totalorder %s19, 1
      %p194 = scmp.ne.s32.totalorder %s189, %s191
      %p195 = scmp.eq.s32.totalorder %s19, 0
      %p196 = por %p194, %p195
      %p197 = scmp.ne.s32.totalorder %s189, %s191
      %p198 = scmp.eq.s32.totalorder %s24, 1
      %p199 = por %p197, %p198
      %p200 = scmp.ne.s32.totalorder %s191, %s192
      %p201 = scmp.eq.s32.totalorder %s24, 0
      %p202 = por %p200, %p201
      %p203 = scmp.ne.s32.totalorder %s191, %s192
      %p204 = scmp.eq.s32.totalorder %s25, 1
      %p205 = por %p203, %p204
      %p207 = scmp.ne.s32.totalorder %s192, %s206
      %p208 = scmp.eq.s32.totalorder %s25, 0
      %p209 = por %p207, %p208
      %s211 = sadd.s32 %s210, 1
      %p214 = scmp.eq.s32.totalorder %s19, 1
      %p215 = scmp.ne.s32.totalorder %s210, %s212
      %p216 = scmp.eq.s32.totalorder %s19, 0
      %p217 = por %p215, %p216
      %p218 = scmp.ne.s32.totalorder %s210, %s212
      %p219 = scmp.eq.s32.totalorder %s24, 1
      %p220 = por %p218, %p219
      %p221 = scmp.ne.s32.totalorder %s212, %s213
      %p222 = scmp.eq.s32.totalorder %s24, 0
      %p223 = por %p221, %p222
      %p224 = scmp.ne.s32.totalorder %s212, %s213
      %p225 = scmp.eq.s32.totalorder %s25, 1
      %p226 = por %p224, %p225
      %p228 = scmp.ne.s32.totalorder %s213, %s227
      %p229 = scmp.eq.s32.totalorder %s25, 0
      %p230 = por %p228, %p229
      %s232 = sadd.s32 %s231, 1
      %p235 = scmp.eq.s32.totalorder %s19, 1
      %p236 = scmp.ne.s32.totalorder %s231, %s233
      %p237 = scmp.eq.s32.totalorder %s19, 0
      %p238 = por %p236, %p237
      %p239 = scmp.ne.s32.totalorder %s231, %s233
      %p240 = scmp.eq.s32.totalorder %s24, 1
      %p241 = por %p239, %p240
      %p242 = scmp.ne.s32.totalorder %s233, %s234
      %p243 = scmp.eq.s32.totalorder %s24, 0
      %p244 = por %p242, %p243
      %p245 = scmp.ne.s32.totalorder %s233, %s234
      %p246 = scmp.eq.s32.totalorder %s25, 1
      %p247 = por %p245, %p246
      %p249 = scmp.ne.s32.totalorder %s234, %s248
      %p250 = scmp.eq.s32.totalorder %s25, 0
      %p251 = por %p249, %p250
      %s252 = ssub.s32 %s19, %s26
      %p253 = scmp.eq.s32.totalorder %s252, 0
      %s255 = sadd.s32 %s254, 1
      %s256 = scalar_select %p253, %s254, %s255
      %p259 = pneg %p253
      %p260 = scmp.eq.s32.totalorder %s19, 1
      %p261 = por %p259, %p260
      %p262 = scmp.ne.s32.totalorder %s254, %s257
      %p263 = scmp.eq.s32.totalorder %s19, 0
      %p264 = por %p262, %p263
      %p265 = scmp.ne.s32.totalorder %s254, %s257
      %p266 = scmp.eq.s32.totalorder %s24, 1
      %p267 = por %p265, %p266
      %p268 = scmp.ne.s32.totalorder %s257, %s258
      %p269 = scmp.eq.s32.totalorder %s24, 0
      %p270 = por %p268, %p269
      %p271 = scmp.ne.s32.totalorder %s257, %s258
      %p272 = scmp.eq.s32.totalorder %s25, 1
      %p273 = por %p271, %p272
      %p275 = scmp.ne.s32.totalorder %s258, %s274
      %p276 = scmp.eq.s32.totalorder %s25, 0
      %p277 = por %p275, %p276
      %p278 = scmp.le.s32.totalorder 1, %s19
      %p279 = scmp.lt.s32.totalorder %s19, 3
      %p280 = pnand %p278, %p279
      %p281 = pneg %p280
      // Predicated region
      $region9: #{_forward.1} parent=5 // pred_check
        _
      $region10: #{_forward.1} parent=5 // pred_check_branch
        %283 = sbr.rel (%p280) target = $region12
      $region11: #{_forward.1} parent=5 // pred_region
        %s284 = ssub.s32 %s19, 1
        // Predicated region
        $region13: #{_forward.1} parent=11 // pred_check
          %p285 = pneg %p118
        $region14: #{_forward.1} parent=11 // pred_check_branch
          %287 = sbr.rel (%p285) target = $region16
        $region15: #{_forward.1} parent=11 // pred_region
          _
        $region16: #{_forward.1} parent=11 // pred_fallthru
          _
        // Predicated region
        $region17: #{_forward.1} parent=11 // pred_check
          %p288 = pneg %p139
        $region18: #{_forward.1} parent=11 // pred_check_branch
          %290 = sbr.rel (%p288) target = $region20
        $region19: #{_forward.1} parent=11 // pred_region
          _
        $region20: #{_forward.1} parent=11 // pred_fallthru
          _
        // Predicated region
        $region21: #{_forward.1} parent=11 // pred_check
          %p291 = pneg %p160
        $region22: #{_forward.1} parent=11 // pred_check_branch
          %293 = sbr.rel (%p291) target = $region24
        $region23: #{_forward.1} parent=11 // pred_region
          _
        $region24: #{_forward.1} parent=11 // pred_fallthru
          _
        // Predicated region
        $region25: #{_forward.1} parent=11 // pred_check
          %p294 = pneg %p181
        $region26: #{_forward.1} parent=11 // pred_check_branch
          %296 = sbr.rel (%p294) target = $region28
        $region27: #{_forward.1} parent=11 // pred_region
          _
        $region28: #{_forward.1} parent=11 // pred_fallthru
          _
        // Predicated region
        $region29: #{_forward.1} parent=11 // pred_check
          %p297 = pneg %p202
        $region30: #{_forward.1} parent=11 // pred_check_branch
          %299 = sbr.rel (%p297) target = $region32
        $region31: #{_forward.1} parent=11 // pred_region
          _
        $region32: #{_forward.1} parent=11 // pred_fallthru
          _
        // Predicated region
        $region33: #{_forward.1} parent=11 // pred_check
          %p300 = pneg %p223
        $region34: #{_forward.1} parent=11 // pred_check_branch
          %302 = sbr.rel (%p300) target = $region36
        $region35: #{_forward.1} parent=11 // pred_region
          _
        $region36: #{_forward.1} parent=11 // pred_fallthru
          _
        // Predicated region
        $region37: #{_forward.1} parent=11 // pred_check
          %p303 = pneg %p244
        $region38: #{_forward.1} parent=11 // pred_check_branch
          %305 = sbr.rel (%p303) target = $region40
        $region39: #{_forward.1} parent=11 // pred_region
          _
        $region40: #{_forward.1} parent=11 // pred_fallthru
          _
      $region12: #{_forward.1} parent=5 // pred_fallthru
        _
      %p306 = scmp.lt.s32.totalorder %s19, 2
      // Predicated region
      $region41: #{_forward.1} parent=5 // pred_check
        %p307 = pneg %p306
      $region42: #{_forward.1} parent=5 // pred_check_branch
        %309 = sbr.rel (%p307) target = $region44
      $region43: #{_forward.1} parent=5 // pred_region
        // Predicated region
        $region45: #{_forward.1} parent=43 // pred_check
          %p310 = pneg %p39
        $region46: #{_forward.1} parent=43 // pred_check_branch
          %312 = sbr.rel (%p310) target = $region48
        $region47: #{_forward.1} parent=43 // pred_region
          %p313 = scmp.lt.s32.totalorder %s19, 1
          %s314 = scalar_select %p313, %s19, 1
          %s315 = smul.addr %s314, 8
          %s316 = scalar_lea.vmem %s0, %s315
        $region48: #{_forward.1} parent=43 // pred_fallthru
          _
        // Predicated region
        $region49: #{_forward.1} parent=43 // pred_check
          %p317 = pneg %p65
        $region50: #{_forward.1} parent=43 // pred_check_branch
          %319 = sbr.rel (%p317) target = $region52
        $region51: #{_forward.1} parent=43 // pred_region
          %p320 = scmp.lt.s32.totalorder %s19, 1
          %s321 = scalar_select %p320, %s19, 1
          %s322 = scalar_lea.vmem %s1, %s321
        $region52: #{_forward.1} parent=43 // pred_fallthru
          _
        // Predicated region
        $region53: #{_forward.1} parent=43 // pred_check
          %p323 = pneg %p91
        $region54: #{_forward.1} parent=43 // pred_check_branch
          %325 = sbr.rel (%p323) target = $region56
        $region55: #{_forward.1} parent=43 // pred_region
          %p326 = scmp.lt.s32.totalorder %s19, 1
          %s327 = scalar_select %p326, %s19, 1
          %s328 = scalar_lea.vmem %s2, %s327
        $region56: #{_forward.1} parent=43 // pred_fallthru
          _
      $region44: #{_forward.1} parent=5 // pred_fallthru
        _
      %p329 = scmp.le.s32.totalorder 1, %s19
      %p330 = scmp.lt.s32.totalorder %s19, 3
      %p331 = pnand %p329, %p330
      %p332 = pneg %p331
      // Predicated region
      $region57: #{_forward.1} parent=5 // pred_check
        _
      $region58: #{_forward.1} parent=5 // pred_check_branch
        %334 = sbr.rel (%p331) target = $region60
      $region59: #{_forward.1} parent=5 // pred_region
        %s335 = ssub.s32 %s19, 1
        %p336 = scmp.lt.s32.totalorder %s24, 1
        %s337 = scalar_select %p336, %s24, 1
        %s338 = smul.addr %s337, 8
        %s339 = scalar_lea.vmem %s0, %s338
        %p340 = pneg %p45
        %p341 = pneg %p42
        %p342 = scmp.lt.s32.totalorder %s24, 1
        %s343 = scalar_select %p342, %s24, 1
        %s344 = scalar_lea.vmem %s1, %s343
        %p345 = pneg %p71
        %p346 = pneg %p68
        %p347 = scmp.lt.s32.totalorder %s24, 1
        %s348 = scalar_select %p347, %s24, 1
        %s349 = scalar_lea.vmem %s2, %s348
        %p350 = pneg %p97
        %p351 = pneg %p94
        %p352 = pneg %p118
        %p353 = pneg %p115
        %p354 = pneg %p139
        %p355 = pneg %p136
        %p356 = pneg %p160
        %p357 = pneg %p157
        %p358 = pneg %p181
        %p359 = pneg %p178
        %p360 = pneg %p202
        %p361 = pneg %p199
        %p362 = pneg %p223
        %p363 = pneg %p220
        %p364 = pneg %p244
        %p365 = pneg %p241
        %p366 = pneg %p270
        %p367 = pneg %p267
        %s368 = sand.u32 %s257, 1
        %s369 = scalar_lea.sflag [#allocation3], %s368
        %s370 = sand.u32 %s257, 1
        %s371 = smul.addr %s370, 8
        %s372 = scalar_lea.vmem [#allocation2], %s371
        %p373 = scmp.lt.s32.totalorder %s24, 1
        %s374 = scalar_select %p373, %s24, 1
        %s375 = smul.addr %s374, 8
        %s376 = scalar_lea.vmem %s0, %s375
        %p377 = scmp.lt.s32.totalorder %s24, 1
        %s378 = scalar_select %p377, %s24, 1
        %s379 = scalar_lea.vmem %s1, %s378
        %p380 = scmp.lt.s32.totalorder %s24, 1
        %s381 = scalar_select %p380, %s24, 1
        %s382 = scalar_lea.vmem %s2, %s381
        %v383 = vld [vmem:[%s9] sm:$0xff]
        %v384 = vld [vmem:[%s4] sm:$0xff]
        %v385 = vld [vmem:[%s4 + $0x8] sm:$0xff]
        %v386 = vld [vmem:[%s4 + $0x10] sm:$0xff]
        %v387 = vld [vmem:[%s4 + $0x18] sm:$0xff]
        %v388 = vld [vmem:[%s4 + $0x20] sm:$0xff]
        %v389 = vld [vmem:[%s4 + $0x28] sm:$0xff]
        %v390 = vld [vmem:[%s4 + $0x30] sm:$0xff]
        %v391 = vld [vmem:[%s4 + $0x38] sm:$0xff]
        %v392 = vld [vmem:[%s376] sm:$0xff]
        %v393 = vld [vmem:[%s379] sm:$0x1]
        %vm394 = vcmask 261120
        %v396 = vsel %vm394, %v392, 0
        %398 = vmatprep.subr.mxu0 0.0
        %399 = vmatpush1.msra.mxu0 0.0
        %400 = vmatprep.subr.mxu0 0.0
        %401 = vmatpush1.msra.mxu0 0.0
        %402 = vmatprep.subr.mxu0 0.0
        %403 = vmatpush1.msra.mxu0 0.0
        %404 = vmatprep.subr.mxu0 0.0
        %405 = vmatpush1.msra.mxu0 0.0
        %406 = vmatprep.subr.mxu0 0.0
        %407 = vmatpush1.msra.mxu0 0.0
        %408 = vmatprep.subr.mxu0 0.0
        %409 = vmatpush1.msra.mxu0 0.0
        %410 = vmatprep.subr.mxu0 0.0
        %411 = vmatpush1.msra.mxu0 0.0
        %412 = vmatprep.subr.mxu0 0.0
        %413 = vmatpush1.msra.mxu0 0.0
        %414 = vmatprep.subr.mxu0 0.0
        %415 = vmatpush1.msra.mxu0 0.0
        %416 = vmatprep.subr.mxu0 0.0
        %417 = vmatpush1.msra.mxu0 0.0
        %418 = vmatprep.subr.mxu0 0.0
        %419 = vmatpush1.msra.mxu0 0.0
        %420 = vmatprep.subr.mxu0 0.0
        %421 = vmatpush1.msra.mxu0 0.0
        %422 = vmatprep.subr.mxu0 0.0
        %423 = vmatpush1.msra.mxu0 %v387
        %424 = vmatprep.subr.mxu0 0.0
        %425 = vmatpush1.msra.mxu0 %v386
        %426 = vmatprep.subr.mxu0 0.0
        %427 = vmatpush1.msra.mxu0 %v385
        %428 = vmatprep.subr.mxu0 0.0
        %429 = vmatpush1.msra.mxu0 %v384
        %430 = vmatprep.subr.mxu0 0.0
        %431 = vmatpush2.msra.mxu0 0.0
        %432 = vmatprep.subr.mxu0 0.0
        %433 = vmatpush2.msra.mxu0 0.0
        %434 = vmatprep.subr.mxu0 0.0
        %435 = vmatpush2.msra.mxu0 0.0
        %436 = vmatprep.subr.mxu0 0.0
        %437 = vmatpush2.msra.mxu0 0.0
        %438 = vmatprep.subr.mxu0 0.0
        %439 = vmatpush2.msra.mxu0 0.0
        %440 = vmatprep.subr.mxu0 0.0
        %441 = vmatpush2.msra.mxu0 0.0
        %442 = vmatprep.subr.mxu0 0.0
        %443 = vmatpush2.msra.mxu0 0.0
        %444 = vmatprep.subr.mxu0 0.0
        %445 = vmatpush2.msra.mxu0 0.0
        %446 = vmatprep.subr.mxu0 0.0
        %447 = vmatpush2.msra.mxu0 0.0
        %448 = vmatprep.subr.mxu0 0.0
        %449 = vmatpush2.msra.mxu0 0.0
        %450 = vmatprep.subr.mxu0 0.0
        %451 = vmatpush2.msra.mxu0 0.0
        %452 = vmatprep.subr.mxu0 0.0
        %453 = vmatpush2.msra.mxu0 0.0
        %454 = vmatprep.subr.mxu0 0.0
        %455 = vmatpush2.msra.mxu0 0.0
        %456 = vmatprep.subr.mxu0 0.0
        %457 = vmatpush2.msra.mxu0 0.0
        %458 = vmatprep.subr.mxu0 0.0
        %459 = vmatpush2.msra.mxu0 0.0
        %460 = vmatprep.subr.mxu0 0.0
        %461 = vmatpush2.msra.mxu0 0.0
        %462 = vmatprep.mubr.f32.mxu0 0.0
        %463 = vmatmul.mubr.f32.gmra.mxu0 %v396
        %v464 = vpop.f32.mrf.mxu0
        %v465 = vadd.f32 0.0, %v464
        %v466 = vpop.f32.mrf.mxu0
        %467 = vdwg.mxu0
        %v469 = vsel %vm394, %v393, 0
        %471 = vmatprep.subr.mxu0 0.0
        %472 = vmatpush1.msra.mxu0 0.0
        %473 = vmatprep.subr.mxu0 0.0
        %474 = vmatpush1.msra.mxu0 0.0
        %475 = vmatprep.subr.mxu0 0.0
        %476 = vmatpush1.msra.mxu0 0.0
        %477 = vmatprep.subr.mxu0 0.0
        %478 = vmatpush1.msra.mxu0 0.0
        %479 = vmatprep.subr.mxu0 0.0
        %480 = vmatpush1.msra.mxu0 0.0
        %481 = vmatprep.subr.mxu0 0.0
        %482 = vmatpush1.msra.mxu0 0.0
        %483 = vmatprep.subr.mxu0 0.0
        %484 = vmatpush1.msra.mxu0 0.0
        %485 = vmatprep.subr.mxu0 0.0
        %486 = vmatpush1.msra.mxu0 0.0
        %487 = vmatprep.subr.mxu0 0.0
        %488 = vmatpush1.msra.mxu0 0.0
        %489 = vmatprep.subr.mxu0 0.0
        %490 = vmatpush1.msra.mxu0 0.0
        %491 = vmatprep.subr.mxu0 0.0
        %492 = vmatpush1.msra.mxu0 0.0
        %493 = vmatprep.subr.mxu0 0.0
        %494 = vmatpush1.msra.mxu0 0.0
        %495 = vmatprep.subr.mxu0 0.0
        %496 = vmatpush1.msra.mxu0 %v391
        %497 = vmatprep.subr.mxu0 0.0
        %498 = vmatpush1.msra.mxu0 %v390
        %499 = vmatprep.subr.mxu0 0.0
        %500 = vmatpush1.msra.mxu0 %v389
        %501 = vmatprep.subr.mxu0 0.0
        %502 = vmatpush1.msra.mxu0 %v388
        %503 = vmatprep.subr.mxu0 0.0
        %504 = vmatpush2.msra.mxu0 0.0
        %505 = vmatprep.subr.mxu0 0.0
        %506 = vmatpush2.msra.mxu0 0.0
        %507 = vmatprep.subr.mxu0 0.0
        %508 = vmatpush2.msra.mxu0 0.0
        %509 = vmatprep.subr.mxu0 0.0
        %510 = vmatpush2.msra.mxu0 0.0
        %511 = vmatprep.subr.mxu0 0.0
        %512 = vmatpush2.msra.mxu0 0.0
        %513 = vmatprep.subr.mxu0 0.0
        %514 = vmatpush2.msra.mxu0 0.0
        %515 = vmatprep.subr.mxu0 0.0
        %516 = vmatpush2.msra.mxu0 0.0
        %517 = vmatprep.subr.mxu0 0.0
        %518 = vmatpush2.msra.mxu0 0.0
        %519 = vmatprep.subr.mxu0 0.0
        %520 = vmatpush2.msra.mxu0 0.0
        %521 = vmatprep.subr.mxu0 0.0
        %522 = vmatpush2.msra.mxu0 0.0
        %523 = vmatprep.subr.mxu0 0.0
        %524 = vmatpush2.msra.mxu0 0.0
        %525 = vmatprep.subr.mxu0 0.0
        %526 = vmatpush2.msra.mxu0 0.0
        %527 = vmatprep.subr.mxu0 0.0
        %528 = vmatpush2.msra.mxu0 0.0
        %529 = vmatprep.subr.mxu0 0.0
        %530 = vmatpush2.msra.mxu0 0.0
        %531 = vmatprep.subr.mxu0 0.0
        %532 = vmatpush2.msra.mxu0 0.0
        %533 = vmatprep.subr.mxu0 0.0
        %534 = vmatpush2.msra.mxu0 0.0
        %535 = vmatprep.mubr.f32.mxu0 0.0
        %536 = vmatmul.mubr.f32.gmra.mxu0 %v469
        %v537 = vpop.f32.mrf.mxu0
        %v538 = vadd.f32 0.0, %v537
        %v539 = vpop.f32.mrf.mxu0
        %540 = vdwg.mxu0
        %v541 = vlaneseq
        %v542 = vshrl.u32 %v541, 7
        %v543 = vsub.s32 0, %v542
        %v544 = vrot.slane %v538, %v543
        %v545 = vadd.f32 %v465, %v544
        %v546 = vld [vmem:[%s3] sm:$0xff]
        %v547 = vadd.f32 %v545, %v546
        %v548 = vld [vmem:[%s382] sm:$0x1]
        %v549 = vmul.f32 %v548, -1e+18
        %v550 = vsel %vm394, %v547, 0.0
        %551 = vadd.xlane.f32.xlu0 %v550
        %v552 = vpop.xlane.xlu0 %551
        %v553 = vrcp.pop 32.0
        %v554 = vmul.f32 %v552, %v553
        %v555 = vsub.f32 %v547, %v554
        %v556 = vmul.f32 %v555, %v555
        %v557 = vsel %vm394, %v556, 0.0
        %558 = vadd.xlane.f32.xlu0 %v557
        %v559 = vpop.xlane.xlu0 %558
        %v560 = vrcp.pop 31.0
        %v561 = vmul.f32 %v559, %v560
        %v562 = vrsqrt.pop %v561
        %v563 = vmul.f32 %v561, %v562
        %vm564 = vcmp.eq.f32.partialorder %v561, inf
        %v565 = vsel %vm564, %v561, %v563
        %vm566 = vcmp.eq.f32.partialorder %v561, 0.0
        %v567 = vand.u32 %v561, 2147483648
        %v568 = vsel %vm566, %v567, %v565
        %v569 = vlaneseq
        %v570 = vshrl.u32 %v569, 7
        %v571 = vsub.s32 0, %v570
        %v572 = vrot.slane %v383, %v571
        %v573 = vmul.f32 %v572, %v555
        %v574 = vadd.f32 %v568, 1e-06
        %v575 = vrcp.pop %v574
        %v576 = vmul.f32 %v573, %v575
        %v577 = vlaneseq
        %v578 = vshrl.u32 %v577, 7
        %v579 = vsub.s32 1, %v578
        %v580 = vrot.slane %v383, %v579
        %v581 = vadd.f32 %v576, %v580
        %v582 = vld [vmem:[%s5] sm:$0xff]
        %v583 = vld [vmem:[%s5 + $0x8] sm:$0xff]
        %v584 = vld [vmem:[%s5 + $0x10] sm:$0xff]
        %v585 = vld [vmem:[%s5 + $0x18] sm:$0xff]
        %v587 = vsel %vm394, %v581, 0
        %589 = vmatprep.subr.mxu0 0.0
        %590 = vmatpush1.msra.mxu0 0.0
        %591 = vmatprep.subr.mxu0 0.0
        %592 = vmatpush1.msra.mxu0 0.0
        %593 = vmatprep.subr.mxu0 0.0
        %594 = vmatpush1.msra.mxu0 0.0
        %595 = vmatprep.subr.mxu0 0.0
        %596 = vmatpush1.msra.mxu0 0.0
        %597 = vmatprep.subr.mxu0 0.0
        %598 = vmatpush1.msra.mxu0 0.0
        %599 = vmatprep.subr.mxu0 0.0
        %600 = vmatpush1.msra.mxu0 0.0
        %601 = vmatprep.subr.mxu0 0.0
        %602 = vmatpush1.msra.mxu0 0.0
        %603 = vmatprep.subr.mxu0 0.0
        %604 = vmatpush1.msra.mxu0 0.0
        %605 = vmatprep.subr.mxu0 0.0
        %606 = vmatpush1.msra.mxu0 0.0
        %607 = vmatprep.subr.mxu0 0.0
        %608 = vmatpush1.msra.mxu0 0.0
        %609 = vmatprep.subr.mxu0 0.0
        %610 = vmatpush1.msra.mxu0 0.0
        %611 = vmatprep.subr.mxu0 0.0
        %612 = vmatpush1.msra.mxu0 0.0
        %613 = vmatprep.subr.mxu0 0.0
        %614 = vmatpush1.msra.mxu0 %v585
        %615 = vmatprep.subr.mxu0 0.0
        %616 = vmatpush1.msra.mxu0 %v584
        %617 = vmatprep.subr.mxu0 0.0
        %618 = vmatpush1.msra.mxu0 %v583
        %619 = vmatprep.subr.mxu0 0.0
        %620 = vmatpush1.msra.mxu0 %v582
        %621 = vmatprep.subr.mxu0 0.0
        %622 = vmatpush2.msra.mxu0 0.0
        %623 = vmatprep.subr.mxu0 0.0
        %624 = vmatpush2.msra.mxu0 0.0
        %625 = vmatprep.subr.mxu0 0.0
        %626 = vmatpush2.msra.mxu0 0.0
        %627 = vmatprep.subr.mxu0 0.0
        %628 = vmatpush2.msra.mxu0 0.0
        %629 = vmatprep.subr.mxu0 0.0
        %630 = vmatpush2.msra.mxu0 0.0
        %631 = vmatprep.subr.mxu0 0.0
        %632 = vmatpush2.msra.mxu0 0.0
        %633 = vmatprep.subr.mxu0 0.0
        %634 = vmatpush2.msra.mxu0 0.0
        %635 = vmatprep.subr.mxu0 0.0
        %636 = vmatpush2.msra.mxu0 0.0
        %637 = vmatprep.subr.mxu0 0.0
        %638 = vmatpush2.msra.mxu0 0.0
        %639 = vmatprep.subr.mxu0 0.0
        %640 = vmatpush2.msra.mxu0 0.0
        %641 = vmatprep.subr.mxu0 0.0
        %642 = vmatpush2.msra.mxu0 0.0
        %643 = vmatprep.subr.mxu0 0.0
        %644 = vmatpush2.msra.mxu0 0.0
        %645 = vmatprep.subr.mxu0 0.0
        %646 = vmatpush2.msra.mxu0 0.0
        %647 = vmatprep.subr.mxu0 0.0
        %648 = vmatpush2.msra.mxu0 0.0
        %649 = vmatprep.subr.mxu0 0.0
        %650 = vmatpush2.msra.mxu0 0.0
        %651 = vmatprep.subr.mxu0 0.0
        %652 = vmatpush2.msra.mxu0 0.0
        %653 = vmatprep.mubr.f32.mxu0 0.0
        %654 = vmatmul.mubr.f32.gmra.mxu0 %v587
        %v655 = vpop.f32.mrf.mxu0
        %v656 = vadd.f32 0.0, %v655
        %v657 = vpop.f32.mrf.mxu0
        %658 = vdwg.mxu0
        %v659 = vmul.f32 %v656, 0.35355338
        %v660 = vld [vmem:[%s6] sm:$0xff]
        %v661 = vld [vmem:[%s6 + $0x8] sm:$0xff]
        %v662 = vld [vmem:[%s6 + $0x10] sm:$0xff]
        %v663 = vld [vmem:[%s6 + $0x18] sm:$0xff]
        %v665 = vlaneseq
        %v666 = vshrl.u32 %v665, 7
        %v667 = vsub.s32 0, %v666
        %v668 = vrot.slane %v549, %v667
        %671 = vrot.lane.b32.xlu0 %v656, 96
        %v672 = vpop.permute.xlu0 %671
        %vm673 = vcmask 64512
        %v675 = vsel %vm673, %v659, 0
        %v677 = vsel %vm673, %v672, 0
        %679 = vmatprep.subr.mxu0 0.0
        %680 = vmatpush1.xpose.msra.mxu0 0.0
        %681 = vmatprep.subr.mxu0 0.0
        %682 = vmatpush1.xpose.msra.mxu0 0.0
        %683 = vmatprep.subr.mxu0 0.0
        %684 = vmatpush1.xpose.msra.mxu0 0.0
        %685 = vmatprep.subr.mxu0 0.0
        %686 = vmatpush1.xpose.msra.mxu0 0.0
        %687 = vmatprep.subr.mxu0 0.0
        %688 = vmatpush1.xpose.msra.mxu0 0.0
        %689 = vmatprep.subr.mxu0 0.0
        %690 = vmatpush1.xpose.msra.mxu0 0.0
        %691 = vmatprep.subr.mxu0 0.0
        %692 = vmatpush1.xpose.msra.mxu0 0.0
        %693 = vmatprep.subr.mxu0 0.0
        %694 = vmatpush1.xpose.msra.mxu0 0.0
        %695 = vmatprep.subr.mxu0 0.0
        %696 = vmatpush1.xpose.msra.mxu0 0.0
        %697 = vmatprep.subr.mxu0 0.0
        %698 = vmatpush1.xpose.msra.mxu0 0.0
        %699 = vmatprep.subr.mxu0 0.0
        %700 = vmatpush1.xpose.msra.mxu0 0.0
        %701 = vmatprep.subr.mxu0 0.0
        %702 = vmatpush1.xpose.msra.mxu0 0.0
        %703 = vmatprep.subr.mxu0 0.0
        %704 = vmatpush1.xpose.msra.mxu0 0.0
        %705 = vmatprep.subr.mxu0 0.0
        %706 = vmatpush1.xpose.msra.mxu0 0.0
        %707 = vmatprep.subr.mxu0 0.0
        %708 = vmatpush1.xpose.msra.mxu0 0.0
        %709 = vmatprep.subr.mxu0 0.0
        %710 = vmatpush1.xpose.msra.mxu0 %v677
        %711 = vmatprep.subr.mxu0 0.0
        %712 = vmatpush2.xpose.msra.mxu0 0.0
        %713 = vmatprep.subr.mxu0 0.0
        %714 = vmatpush2.xpose.msra.mxu0 0.0
        %715 = vmatprep.subr.mxu0 0.0
        %716 = vmatpush2.xpose.msra.mxu0 0.0
        %717 = vmatprep.subr.mxu0 0.0
        %718 = vmatpush2.xpose.msra.mxu0 0.0
        %719 = vmatprep.subr.mxu0 0.0
        %720 = vmatpush2.xpose.msra.mxu0 0.0
        %721 = vmatprep.subr.mxu0 0.0
        %722 = vmatpush2.xpose.msra.mxu0 0.0
        %723 = vmatprep.subr.mxu0 0.0
        %724 = vmatpush2.xpose.msra.mxu0 0.0
        %725 = vmatprep.subr.mxu0 0.0
        %726 = vmatpush2.xpose.msra.mxu0 0.0
        %727 = vmatprep.subr.mxu0 0.0
        %728 = vmatpush2.xpose.msra.mxu0 0.0
        %729 = vmatprep.subr.mxu0 0.0
        %730 = vmatpush2.xpose.msra.mxu0 0.0
        %731 = vmatprep.subr.mxu0 0.0
        %732 = vmatpush2.xpose.msra.mxu0 0.0
        %733 = vmatprep.subr.mxu0 0.0
        %734 = vmatpush2.xpose.msra.mxu0 0.0
        %735 = vmatprep.subr.mxu0 0.0
        %736 = vmatpush2.xpose.msra.mxu0 0.0
        %737 = vmatprep.subr.mxu0 0.0
        %738 = vmatpush2.xpose.msra.mxu0 0.0
        %739 = vmatprep.subr.mxu0 0.0
        %740 = vmatpush2.xpose.msra.mxu0 0.0
        %741 = vmatprep.subr.mxu0 0.0
        %742 = vmatpush2.xpose.msra.mxu0 0.0
        %743 = vmatprep.mubr.f32.mxu0 0.0
        %744 = vmatmul.mubr.f32.gmra.mxu0 %v675
        %v745 = vpop.f32.mrf.mxu0
        %v746 = vadd.f32 %v668, %v745
        %v747 = vpop.f32.mrf.mxu0
        %748 = vdwg.mxu0
        %v749 = vsel %vm673, %v746, -inf
        %750 = vmax.xlane.f32.xlu0 %v749
        %v751 = vpop.xlane.xlu0 %750
        %v752 = vsub.f32 %v746, %v751
        %v753 = vmul.f32 %v752, 1.442695
        %v754 = vpow.pop %v753
        %v755 = vsel %vm673, %v754, 0.0
        %756 = vadd.xlane.f32.xlu0 %v755
        %v757 = vpop.xlane.xlu0 %756
        %v758 = vrcp.pop %v757
        %v759 = vmul.f32 %v754, %v758
        %760 = vrot.lane.b32.xlu0 %v656, 64
        %v761 = vpop.permute.xlu0 %760
        %v764 = vsel %vm673, %v759, 0
        %766 = vmatprep.subr.mxu0 0.0
        %767 = vmatpush1.msra.mxu0 0.0
        %768 = vmatprep.subr.mxu0 0.0
        %769 = vmatpush1.msra.mxu0 0.0
        %770 = vmatprep.subr.mxu0 0.0
        %771 = vmatpush1.msra.mxu0 0.0
        %772 = vmatprep.subr.mxu0 0.0
        %773 = vmatpush1.msra.mxu0 0.0
        %774 = vmatprep.subr.mxu0 0.0
        %775 = vmatpush1.msra.mxu0 0.0
        %776 = vmatprep.subr.mxu0 0.0
        %777 = vmatpush1.msra.mxu0 0.0
        %778 = vmatprep.subr.mxu0 0.0
        %779 = vmatpush1.msra.mxu0 0.0
        %780 = vmatprep.subr.mxu0 0.0
        %781 = vmatpush1.msra.mxu0 0.0
        %782 = vmatprep.subr.mxu0 0.0
        %783 = vmatpush1.msra.mxu0 0.0
        %784 = vmatprep.subr.mxu0 0.0
        %785 = vmatpush1.msra.mxu0 0.0
        %786 = vmatprep.subr.mxu0 0.0
        %787 = vmatpush1.msra.mxu0 0.0
        %788 = vmatprep.subr.mxu0 0.0
        %789 = vmatpush1.msra.mxu0 0.0
        %790 = vmatprep.subr.mxu0 0.0
        %791 = vmatpush1.msra.mxu0 0.0
        %792 = vmatprep.subr.mxu0 0.0
        %793 = vmatpush1.msra.mxu0 0.0
        %794 = vmatprep.subr.mxu0 0.0
        %795 = vmatpush1.msra.mxu0 0.0
        %796 = vmatprep.subr.mxu0 0.0
        %797 = vmatpush1.msra.mxu0 %v761
        %798 = vmatprep.subr.mxu0 0.0
        %799 = vmatpush2.msra.mxu0 0.0
        %800 = vmatprep.subr.mxu0 0.0
        %801 = vmatpush2.msra.mxu0 0.0
        %802 = vmatprep.subr.mxu0 0.0
        %803 = vmatpush2.msra.mxu0 0.0
        %804 = vmatprep.subr.mxu0 0.0
        %805 = vmatpush2.msra.mxu0 0.0
        %806 = vmatprep.subr.mxu0 0.0
        %807 = vmatpush2.msra.mxu0 0.0
        %808 = vmatprep.subr.mxu0 0.0
        %809 = vmatpush2.msra.mxu0 0.0
        %810 = vmatprep.subr.mxu0 0.0
        %811 = vmatpush2.msra.mxu0 0.0
        %812 = vmatprep.subr.mxu0 0.0
        %813 = vmatpush2.msra.mxu0 0.0
        %814 = vmatprep.subr.mxu0 0.0
        %815 = vmatpush2.msra.mxu0 0.0
        %816 = vmatprep.subr.mxu0 0.0
        %817 = vmatpush2.msra.mxu0 0.0
        %818 = vmatprep.subr.mxu0 0.0
        %819 = vmatpush2.msra.mxu0 0.0
        %820 = vmatprep.subr.mxu0 0.0
        %821 = vmatpush2.msra.mxu0 0.0
        %822 = vmatprep.subr.mxu0 0.0
        %823 = vmatpush2.msra.mxu0 0.0
        %824 = vmatprep.subr.mxu0 0.0
        %825 = vmatpush2.msra.mxu0 0.0
        %826 = vmatprep.subr.mxu0 0.0
        %827 = vmatpush2.msra.mxu0 0.0
        %828 = vmatprep.subr.mxu0 0.0
        %829 = vmatpush2.msra.mxu0 0.0
        %830 = vmatprep.mubr.f32.mxu0 0.0
        %831 = vmatmul.mubr.f32.gmra.mxu0 %v764
        %v832 = vpop.f32.mrf.mxu0
        %v833 = vadd.f32 0.0, %v832
        %v834 = vpop.f32.mrf.mxu0
        %835 = vdwg.mxu0
        %836 = vrot.lane.b32.xlu0 %v659, 120
        %v837 = vpop.permute.xlu0 %836
        %838 = vrot.lane.b32.xlu0 %v656, 88
        %v839 = vpop.permute.xlu0 %838
        %v840 = vsel %vm673, %v837, 0
        %v842 = vsel %vm673, %v839, 0
        %844 = vmatprep.subr.mxu0 0.0
        %845 = vmatpush1.xpose.msra.mxu0 0.0
        %846 = vmatprep.subr.mxu0 0.0
        %847 = vmatpush1.xpose.msra.mxu0 0.0
        %848 = vmatprep.subr.mxu0 0.0
        %849 = vmatpush1.xpose.msra.mxu0 0.0
        %850 = vmatprep.subr.mxu0 0.0
        %851 = vmatpush1.xpose.msra.mxu0 0.0
        %852 = vmatprep.subr.mxu0 0.0
        %853 = vmatpush1.xpose.msra.mxu0 0.0
        %854 = vmatprep.subr.mxu0 0.0
        %855 = vmatpush1.xpose.msra.mxu0 0.0
        %856 = vmatprep.subr.mxu0 0.0
        %857 = vmatpush1.xpose.msra.mxu0 0.0
        %858 = vmatprep.subr.mxu0 0.0
        %859 = vmatpush1.xpose.msra.mxu0 0.0
        %860 = vmatprep.subr.mxu0 0.0
        %861 = vmatpush1.xpose.msra.mxu0 0.0
        %862 = vmatprep.subr.mxu0 0.0
        %863 = vmatpush1.xpose.msra.mxu0 0.0
        %864 = vmatprep.subr.mxu0 0.0
        %865 = vmatpush1.xpose.msra.mxu0 0.0
        %866 = vmatprep.subr.mxu0 0.0
        %867 = vmatpush1.xpose.msra.mxu0 0.0
        %868 = vmatprep.subr.mxu0 0.0
        %869 = vmatpush1.xpose.msra.mxu0 0.0
        %870 = vmatprep.subr.mxu0 0.0
        %871 = vmatpush1.xpose.msra.mxu0 0.0
        %872 = vmatprep.subr.mxu0 0.0
        %873 = vmatpush1.xpose.msra.mxu0 0.0
        %874 = vmatprep.subr.mxu0 0.0
        %875 = vmatpush1.xpose.msra.mxu0 %v842
        %876 = vmatprep.subr.mxu0 0.0
        %877 = vmatpush2.xpose.msra.mxu0 0.0
        %878 = vmatprep.subr.mxu0 0.0
        %879 = vmatpush2.xpose.msra.mxu0 0.0
        %880 = vmatprep.subr.mxu0 0.0
        %881 = vmatpush2.xpose.msra.mxu0 0.0
        %882 = vmatprep.subr.mxu0 0.0
        %883 = vmatpush2.xpose.msra.mxu0 0.0
        %884 = vmatprep.subr.mxu0 0.0
        %885 = vmatpush2.xpose.msra.mxu0 0.0
        %886 = vmatprep.subr.mxu0 0.0
        %887 = vmatpush2.xpose.msra.mxu0 0.0
        %888 = vmatprep.subr.mxu0 0.0
        %889 = vmatpush2.xpose.msra.mxu0 0.0
        %890 = vmatprep.subr.mxu0 0.0
        %891 = vmatpush2.xpose.msra.mxu0 0.0
        %892 = vmatprep.subr.mxu0 0.0
        %893 = vmatpush2.xpose.msra.mxu0 0.0
        %894 = vmatprep.subr.mxu0 0.0
        %895 = vmatpush2.xpose.msra.mxu0 0.0
        %896 = vmatprep.subr.mxu0 0.0
        %897 = vmatpush2.xpose.msra.mxu0 0.0
        %898 = vmatprep.subr.mxu0 0.0
        %899 = vmatpush2.xpose.msra.mxu0 0.0
        %900 = vmatprep.subr.mxu0 0.0
        %901 = vmatpush2.xpose.msra.mxu0 0.0
        %902 = vmatprep.subr.mxu0 0.0
        %903 = vmatpush2.xpose.msra.mxu0 0.0
        %904 = vmatprep.subr.mxu0 0.0
        %905 = vmatpush2.xpose.msra.mxu0 0.0
        %906 = vmatprep.subr.mxu0 0.0
        %907 = vmatpush2.xpose.msra.mxu0 0.0
        %908 = vmatprep.mubr.f32.mxu0 0.0
        %909 = vmatmul.mubr.f32.gmra.mxu0 %v840
        %v910 = vpop.f32.mrf.mxu0
        %v911 = vadd.f32 %v668, %v910
        %v912 = vpop.f32.mrf.mxu0
        %913 = vdwg.mxu0
        %v914 = vsel %vm673, %v911, -inf
        %915 = vmax.xlane.f32.xlu0 %v914
        %v916 = vpop.xlane.xlu0 %915
        %v917 = vsub.f32 %v911, %v916
        %v918 = vmul.f32 %v917, 1.442695
        %v919 = vpow.pop %v918
        %v920 = vsel %vm673, %v919, 0.0
        %921 = vadd.xlane.f32.xlu0 %v920
        %v922 = vpop.xlane.xlu0 %921
        %v923 = vrcp.pop %v922
        %v924 = vmul.f32 %v919, %v923
        %925 = vrot.lane.b32.xlu0 %v656, 56
        %v926 = vpop.permute.xlu0 %925
        %v929 = vsel %vm673, %v924, 0
        %931 = vmatprep.subr.mxu0 0.0
        %932 = vmatpush1.msra.mxu0 0.0
        %933 = vmatprep.subr.mxu0 0.0
        %934 = vmatpush1.msra.mxu0 0.0
        %935 = vmatprep.subr.mxu0 0.0
        %936 = vmatpush1.msra.mxu0 0.0
        %937 = vmatprep.subr.mxu0 0.0
        %938 = vmatpush1.msra.mxu0 0.0
        %939 = vmatprep.subr.mxu0 0.0
        %940 = vmatpush1.msra.mxu0 0.0
        %941 = vmatprep.subr.mxu0 0.0
        %942 = vmatpush1.msra.mxu0 0.0
        %943 = vmatprep.subr.mxu0 0.0
        %944 = vmatpush1.msra.mxu0 0.0
        %945 = vmatprep.subr.mxu0 0.0
        %946 = vmatpush1.msra.mxu0 0.0
        %947 = vmatprep.subr.mxu0 0.0
        %948 = vmatpush1.msra.mxu0 0.0
        %949 = vmatprep.subr.mxu0 0.0
        %950 = vmatpush1.msra.mxu0 0.0
        %951 = vmatprep.subr.mxu0 0.0
        %952 = vmatpush1.msra.mxu0 0.0
        %953 = vmatprep.subr.mxu0 0.0
        %954 = vmatpush1.msra.mxu0 0.0
        %955 = vmatprep.subr.mxu0 0.0
        %956 = vmatpush1.msra.mxu0 0.0
        %957 = vmatprep.subr.mxu0 0.0
        %958 = vmatpush1.msra.mxu0 0.0
        %959 = vmatprep.subr.mxu0 0.0
        %960 = vmatpush1.msra.mxu0 0.0
        %961 = vmatprep.subr.mxu0 0.0
        %962 = vmatpush1.msra.mxu0 %v926
        %963 = vmatprep.subr.mxu0 0.0
        %964 = vmatpush2.msra.mxu0 0.0
        %965 = vmatprep.subr.mxu0 0.0
        %966 = vmatpush2.msra.mxu0 0.0
        %967 = vmatprep.subr.mxu0 0.0
        %968 = vmatpush2.msra.mxu0 0.0
        %969 = vmatprep.subr.mxu0 0.0
        %970 = vmatpush2.msra.mxu0 0.0
        %971 = vmatprep.subr.mxu0 0.0
        %972 = vmatpush2.msra.mxu0 0.0
        %973 = vmatprep.subr.mxu0 0.0
        %974 = vmatpush2.msra.mxu0 0.0
        %975 = vmatprep.subr.mxu0 0.0
        %976 = vmatpush2.msra.mxu0 0.0
        %977 = vmatprep.subr.mxu0 0.0
        %978 = vmatpush2.msra.mxu0 0.0
        %979 = vmatprep.subr.mxu0 0.0
        %980 = vmatpush2.msra.mxu0 0.0
        %981 = vmatprep.subr.mxu0 0.0
        %982 = vmatpush2.msra.mxu0 0.0
        %983 = vmatprep.subr.mxu0 0.0
        %984 = vmatpush2.msra.mxu0 0.0
        %985 = vmatprep.subr.mxu0 0.0
        %986 = vmatpush2.msra.mxu0 0.0
        %987 = vmatprep.subr.mxu0 0.0
        %988 = vmatpush2.msra.mxu0 0.0
        %989 = vmatprep.subr.mxu0 0.0
        %990 = vmatpush2.msra.mxu0 0.0
        %991 = vmatprep.subr.mxu0 0.0
        %992 = vmatpush2.msra.mxu0 0.0
        %993 = vmatprep.subr.mxu0 0.0
        %994 = vmatpush2.msra.mxu0 0.0
        %995 = vmatprep.mubr.f32.mxu0 0.0
        %996 = vmatmul.mubr.f32.gmra.mxu0 %v929
        %v997 = vpop.f32.mrf.mxu0
        %v998 = vadd.f32 0.0, %v997
        %v999 = vpop.f32.mrf.mxu0
        %1000 = vdwg.mxu0
        %v1002 = vsel %vm673, %v998, 0
        %1004 = vmatprep.subr.mxu0 0.0
        %1005 = vmatpush1.msra.mxu0 0.0
        %1006 = vmatprep.subr.mxu0 0.0
        %1007 = vmatpush1.msra.mxu0 0.0
        %1008 = vmatprep.subr.mxu0 0.0
        %1009 = vmatpush1.msra.mxu0 0.0
        %1010 = vmatprep.subr.mxu0 0.0
        %1011 = vmatpush1.msra.mxu0 0.0
        %1012 = vmatprep.subr.mxu0 0.0
        %1013 = vmatpush1.msra.mxu0 0.0
        %1014 = vmatprep.subr.mxu0 0.0
        %1015 = vmatpush1.msra.mxu0 0.0
        %1016 = vmatprep.subr.mxu0 0.0
        %1017 = vmatpush1.msra.mxu0 0.0
        %1018 = vmatprep.subr.mxu0 0.0
        %1019 = vmatpush1.msra.mxu0 0.0
        %1020 = vmatprep.subr.mxu0 0.0
        %1021 = vmatpush1.msra.mxu0 0.0
        %1022 = vmatprep.subr.mxu0 0.0
        %1023 = vmatpush1.msra.mxu0 0.0
        %1024 = vmatprep.subr.mxu0 0.0
        %1025 = vmatpush1.msra.mxu0 0.0
        %1026 = vmatprep.subr.mxu0 0.0
        %1027 = vmatpush1.msra.mxu0 0.0
        %1028 = vmatprep.subr.mxu0 0.0
        %1029 = vmatpush1.msra.mxu0 0.0
        %1030 = vmatprep.subr.mxu0 0.0
        %1031 = vmatpush1.msra.mxu0 0.0
        %1032 = vmatprep.subr.mxu0 0.0
        %1033 = vmatpush1.msra.mxu0 0.0
        %1034 = vmatprep.subr.mxu0 0.0
        %1035 = vmatpush1.msra.mxu0 %v661
        %1036 = vmatprep.subr.mxu0 0.0
        %1037 = vmatpush2.msra.mxu0 0.0
        %1038 = vmatprep.subr.mxu0 0.0
        %1039 = vmatpush2.msra.mxu0 0.0
        %1040 = vmatprep.subr.mxu0 0.0
        %1041 = vmatpush2.msra.mxu0 0.0
        %1042 = vmatprep.subr.mxu0 0.0
        %1043 = vmatpush2.msra.mxu0 0.0
        %1044 = vmatprep.subr.mxu0 0.0
        %1045 = vmatpush2.msra.mxu0 0.0
        %1046 = vmatprep.subr.mxu0 0.0
        %1047 = vmatpush2.msra.mxu0 0.0
        %1048 = vmatprep.subr.mxu0 0.0
        %1049 = vmatpush2.msra.mxu0 0.0
        %1050 = vmatprep.subr.mxu0 0.0
        %1051 = vmatpush2.msra.mxu0 0.0
        %1052 = vmatprep.subr.mxu0 0.0
        %1053 = vmatpush2.msra.mxu0 0.0
        %1054 = vmatprep.subr.mxu0 0.0
        %1055 = vmatpush2.msra.mxu0 0.0
        %1056 = vmatprep.subr.mxu0 0.0
        %1057 = vmatpush2.msra.mxu0 0.0
        %1058 = vmatprep.subr.mxu0 0.0
        %1059 = vmatpush2.msra.mxu0 0.0
        %1060 = vmatprep.subr.mxu0 0.0
        %1061 = vmatpush2.msra.mxu0 0.0
        %1062 = vmatprep.subr.mxu0 0.0
        %1063 = vmatpush2.msra.mxu0 0.0
        %1064 = vmatprep.subr.mxu0 0.0
        %1065 = vmatpush2.msra.mxu0 0.0
        %1066 = vmatprep.subr.mxu0 0.0
        %1067 = vmatpush2.msra.mxu0 0.0
        %1068 = vmatprep.mubr.f32.mxu0 0.0
        %1069 = vmatmul.mubr.f32.gmra.mxu0 %v1002
        %v1070 = vpop.f32.mrf.mxu0
        %v1071 = vadd.f32 0.0, %v1070
        %v1072 = vpop.f32.mrf.mxu0
        %1073 = vdwg.mxu0
        %v1075 = vsel %vm673, %v833, 0
        %1077 = vmatprep.subr.mxu0 0.0
        %1078 = vmatpush1.msra.mxu0 0.0
        %1079 = vmatprep.subr.mxu0 0.0
        %1080 = vmatpush1.msra.mxu0 0.0
        %1081 = vmatprep.subr.mxu0 0.0
        %1082 = vmatpush1.msra.mxu0 0.0
        %1083 = vmatprep.subr.mxu0 0.0
        %1084 = vmatpush1.msra.mxu0 0.0
        %1085 = vmatprep.subr.mxu0 0.0
        %1086 = vmatpush1.msra.mxu0 0.0
        %1087 = vmatprep.subr.mxu0 0.0
        %1088 = vmatpush1.msra.mxu0 0.0
        %1089 = vmatprep.subr.mxu0 0.0
        %1090 = vmatpush1.msra.mxu0 0.0
        %1091 = vmatprep.subr.mxu0 0.0
        %1092 = vmatpush1.msra.mxu0 0.0
        %1093 = vmatprep.subr.mxu0 0.0
        %1094 = vmatpush1.msra.mxu0 0.0
        %1095 = vmatprep.subr.mxu0 0.0
        %1096 = vmatpush1.msra.mxu0 0.0
        %1097 = vmatprep.subr.mxu0 0.0
        %1098 = vmatpush1.msra.mxu0 0.0
        %1099 = vmatprep.subr.mxu0 0.0
        %1100 = vmatpush1.msra.mxu0 0.0
        %1101 = vmatprep.subr.mxu0 0.0
        %1102 = vmatpush1.msra.mxu0 0.0
        %1103 = vmatprep.subr.mxu0 0.0
        %1104 = vmatpush1.msra.mxu0 0.0
        %1105 = vmatprep.subr.mxu0 0.0
        %1106 = vmatpush1.msra.mxu0 0.0
        %1107 = vmatprep.subr.mxu0 0.0
        %1108 = vmatpush1.msra.mxu0 %v660
        %1109 = vmatprep.subr.mxu0 0.0
        %1110 = vmatpush2.msra.mxu0 0.0
        %1111 = vmatprep.subr.mxu0 0.0
        %1112 = vmatpush2.msra.mxu0 0.0
        %1113 = vmatprep.subr.mxu0 0.0
        %1114 = vmatpush2.msra.mxu0 0.0
        %1115 = vmatprep.subr.mxu0 0.0
        %1116 = vmatpush2.msra.mxu0 0.0
        %1117 = vmatprep.subr.mxu0 0.0
        %1118 = vmatpush2.msra.mxu0 0.0
        %1119 = vmatprep.subr.mxu0 0.0
        %1120 = vmatpush2.msra.mxu0 0.0
        %1121 = vmatprep.subr.mxu0 0.0
        %1122 = vmatpush2.msra.mxu0 0.0
        %1123 = vmatprep.subr.mxu0 0.0
        %1124 = vmatpush2.msra.mxu0 0.0
        %1125 = vmatprep.subr.mxu0 0.0
        %1126 = vmatpush2.msra.mxu0 0.0
        %1127 = vmatprep.subr.mxu0 0.0
        %1128 = vmatpush2.msra.mxu0 0.0
        %1129 = vmatprep.subr.mxu0 0.0
        %1130 = vmatpush2.msra.mxu0 0.0
        %1131 = vmatprep.subr.mxu0 0.0
        %1132 = vmatpush2.msra.mxu0 0.0
        %1133 = vmatprep.subr.mxu0 0.0
        %1134 = vmatpush2.msra.mxu0 0.0
        %1135 = vmatprep.subr.mxu0 0.0
        %1136 = vmatpush2.msra.mxu0 0.0
        %1137 = vmatprep.subr.mxu0 0.0
        %1138 = vmatpush2.msra.mxu0 0.0
        %1139 = vmatprep.subr.mxu0 0.0
        %1140 = vmatpush2.msra.mxu0 0.0
        %1141 = vmatprep.mubr.f32.mxu0 0.0
        %1142 = vmatmul.mubr.f32.gmra.mxu0 %v1075
        %v1143 = vpop.f32.mrf.mxu0
        %v1144 = vadd.f32 %v1071, %v1143
        %v1145 = vpop.f32.mrf.mxu0
        %1146 = vdwg.mxu0
        %1147 = vrot.lane.b32.xlu0 %v659, 112
        %v1148 = vpop.permute.xlu0 %1147
        %1149 = vrot.lane.b32.xlu0 %v656, 80
        %v1150 = vpop.permute.xlu0 %1149
        %v1151 = vsel %vm673, %v1148, 0
        %v1153 = vsel %vm673, %v1150, 0
        %1155 = vmatprep.subr.mxu0 0.0
        %1156 = vmatpush1.xpose.msra.mxu0 0.0
        %1157 = vmatprep.subr.mxu0 0.0
        %1158 = vmatpush1.xpose.msra.mxu0 0.0
        %1159 = vmatprep.subr.mxu0 0.0
        %1160 = vmatpush1.xpose.msra.mxu0 0.0
        %1161 = vmatprep.subr.mxu0 0.0
        %1162 = vmatpush1.xpose.msra.mxu0 0.0
        %1163 = vmatprep.subr.mxu0 0.0
        %1164 = vmatpush1.xpose.msra.mxu0 0.0
        %1165 = vmatprep.subr.mxu0 0.0
        %1166 = vmatpush1.xpose.msra.mxu0 0.0
        %1167 = vmatprep.subr.mxu0 0.0
        %1168 = vmatpush1.xpose.msra.mxu0 0.0
        %1169 = vmatprep.subr.mxu0 0.0
        %1170 = vmatpush1.xpose.msra.mxu0 0.0
        %1171 = vmatprep.subr.mxu0 0.0
        %1172 = vmatpush1.xpose.msra.mxu0 0.0
        %1173 = vmatprep.subr.mxu0 0.0
        %1174 = vmatpush1.xpose.msra.mxu0 0.0
        %1175 = vmatprep.subr.mxu0 0.0
        %1176 = vmatpush1.xpose.msra.mxu0 0.0
        %1177 = vmatprep.subr.mxu0 0.0
        %1178 = vmatpush1.xpose.msra.mxu0 0.0
        %1179 = vmatprep.subr.mxu0 0.0
        %1180 = vmatpush1.xpose.msra.mxu0 0.0
        %1181 = vmatprep.subr.mxu0 0.0
        %1182 = vmatpush1.xpose.msra.mxu0 0.0
        %1183 = vmatprep.subr.mxu0 0.0
        %1184 = vmatpush1.xpose.msra.mxu0 0.0
        %1185 = vmatprep.subr.mxu0 0.0
        %1186 = vmatpush1.xpose.msra.mxu0 %v1153
        %1187 = vmatprep.subr.mxu0 0.0
        %1188 = vmatpush2.xpose.msra.mxu0 0.0
        %1189 = vmatprep.subr.mxu0 0.0
        %1190 = vmatpush2.xpose.msra.mxu0 0.0
        %1191 = vmatprep.subr.mxu0 0.0
        %1192 = vmatpush2.xpose.msra.mxu0 0.0
        %1193 = vmatprep.subr.mxu0 0.0
        %1194 = vmatpush2.xpose.msra.mxu0 0.0
        %1195 = vmatprep.subr.mxu0 0.0
        %1196 = vmatpush2.xpose.msra.mxu0 0.0
        %1197 = vmatprep.subr.mxu0 0.0
        %1198 = vmatpush2.xpose.msra.mxu0 0.0
        %1199 = vmatprep.subr.mxu0 0.0
        %1200 = vmatpush2.xpose.msra.mxu0 0.0
        %1201 = vmatprep.subr.mxu0 0.0
        %1202 = vmatpush2.xpose.msra.mxu0 0.0
        %1203 = vmatprep.subr.mxu0 0.0
        %1204 = vmatpush2.xpose.msra.mxu0 0.0
        %1205 = vmatprep.subr.mxu0 0.0
        %1206 = vmatpush2.xpose.msra.mxu0 0.0
        %1207 = vmatprep.subr.mxu0 0.0
        %1208 = vmatpush2.xpose.msra.mxu0 0.0
        %1209 = vmatprep.subr.mxu0 0.0
        %1210 = vmatpush2.xpose.msra.mxu0 0.0
        %1211 = vmatprep.subr.mxu0 0.0
        %1212 = vmatpush2.xpose.msra.mxu0 0.0
        %1213 = vmatprep.subr.mxu0 0.0
        %1214 = vmatpush2.xpose.msra.mxu0 0.0
        %1215 = vmatprep.subr.mxu0 0.0
        %1216 = vmatpush2.xpose.msra.mxu0 0.0
        %1217 = vmatprep.subr.mxu0 0.0
        %1218 = vmatpush2.xpose.msra.mxu0 0.0
        %1219 = vmatprep.mubr.f32.mxu0 0.0
        %1220 = vmatmul.mubr.f32.gmra.mxu0 %v1151
        %v1221 = vpop.f32.mrf.mxu0
        %v1222 = vadd.f32 %v668, %v1221
        %v1223 = vpop.f32.mrf.mxu0
        %1224 = vdwg.mxu0
        %v1225 = vsel %vm673, %v1222, -inf
        %1226 = vmax.xlane.f32.xlu0 %v1225
        %v1227 = vpop.xlane.xlu0 %1226
        %v1228 = vsub.f32 %v1222, %v1227
        %v1229 = vmul.f32 %v1228, 1.442695
        %v1230 = vpow.pop %v1229
        %v1231 = vsel %vm673, %v1230, 0.0
        %1232 = vadd.xlane.f32.xlu0 %v1231
        %v1233 = vpop.xlane.xlu0 %1232
        %v1234 = vrcp.pop %v1233
        %v1235 = vmul.f32 %v1230, %v1234
        %1236 = vrot.lane.b32.xlu0 %v656, 48
        %v1237 = vpop.permute.xlu0 %1236
        %v1240 = vsel %vm673, %v1235, 0
        %1242 = vmatprep.subr.mxu0 0.0
        %1243 = vmatpush1.msra.mxu0 0.0
        %1244 = vmatprep.subr.mxu0 0.0
        %1245 = vmatpush1.msra.mxu0 0.0
        %1246 = vmatprep.subr.mxu0 0.0
        %1247 = vmatpush1.msra.mxu0 0.0
        %1248 = vmatprep.subr.mxu0 0.0
        %1249 = vmatpush1.msra.mxu0 0.0
        %1250 = vmatprep.subr.mxu0 0.0
        %1251 = vmatpush1.msra.mxu0 0.0
        %1252 = vmatprep.subr.mxu0 0.0
        %1253 = vmatpush1.msra.mxu0 0.0
        %1254 = vmatprep.subr.mxu0 0.0
        %1255 = vmatpush1.msra.mxu0 0.0
        %1256 = vmatprep.subr.mxu0 0.0
        %1257 = vmatpush1.msra.mxu0 0.0
        %1258 = vmatprep.subr.mxu0 0.0
        %1259 = vmatpush1.msra.mxu0 0.0
        %1260 = vmatprep.subr.mxu0 0.0
        %1261 = vmatpush1.msra.mxu0 0.0
        %1262 = vmatprep.subr.mxu0 0.0
        %1263 = vmatpush1.msra.mxu0 0.0
        %1264 = vmatprep.subr.mxu0 0.0
        %1265 = vmatpush1.msra.mxu0 0.0
        %1266 = vmatprep.subr.mxu0 0.0
        %1267 = vmatpush1.msra.mxu0 0.0
        %1268 = vmatprep.subr.mxu0 0.0
        %1269 = vmatpush1.msra.mxu0 0.0
        %1270 = vmatprep.subr.mxu0 0.0
        %1271 = vmatpush1.msra.mxu0 0.0
        %1272 = vmatprep.subr.mxu0 0.0
        %1273 = vmatpush1.msra.mxu0 %v1237
        %1274 = vmatprep.subr.mxu0 0.0
        %1275 = vmatpush2.msra.mxu0 0.0
        %1276 = vmatprep.subr.mxu0 0.0
        %1277 = vmatpush2.msra.mxu0 0.0
        %1278 = vmatprep.subr.mxu0 0.0
        %1279 = vmatpush2.msra.mxu0 0.0
        %1280 = vmatprep.subr.mxu0 0.0
        %1281 = vmatpush2.msra.mxu0 0.0
        %1282 = vmatprep.subr.mxu0 0.0
        %1283 = vmatpush2.msra.mxu0 0.0
        %1284 = vmatprep.subr.mxu0 0.0
        %1285 = vmatpush2.msra.mxu0 0.0
        %1286 = vmatprep.subr.mxu0 0.0
        %1287 = vmatpush2.msra.mxu0 0.0
        %1288 = vmatprep.subr.mxu0 0.0
        %1289 = vmatpush2.msra.mxu0 0.0
        %1290 = vmatprep.subr.mxu0 0.0
        %1291 = vmatpush2.msra.mxu0 0.0
        %1292 = vmatprep.subr.mxu0 0.0
        %1293 = vmatpush2.msra.mxu0 0.0
        %1294 = vmatprep.subr.mxu0 0.0
        %1295 = vmatpush2.msra.mxu0 0.0
        %1296 = vmatprep.subr.mxu0 0.0
        %1297 = vmatpush2.msra.mxu0 0.0
        %1298 = vmatprep.subr.mxu0 0.0
        %1299 = vmatpush2.msra.mxu0 0.0
        %1300 = vmatprep.subr.mxu0 0.0
        %1301 = vmatpush2.msra.mxu0 0.0
        %1302 = vmatprep.subr.mxu0 0.0
        %1303 = vmatpush2.msra.mxu0 0.0
        %1304 = vmatprep.subr.mxu0 0.0
        %1305 = vmatpush2.msra.mxu0 0.0
        %1306 = vmatprep.mubr.f32.mxu0 0.0
        %1307 = vmatmul.mubr.f32.gmra.mxu0 %v1240
        %v1308 = vpop.f32.mrf.mxu0
        %v1309 = vadd.f32 0.0, %v1308
        %v1310 = vpop.f32.mrf.mxu0
        %1311 = vdwg.mxu0
        %v1313 = vsel %vm673, %v1309, 0
        %1315 = vmatprep.subr.mxu0 0.0
        %1316 = vmatpush1.msra.mxu0 0.0
        %1317 = vmatprep.subr.mxu0 0.0
        %1318 = vmatpush1.msra.mxu0 0.0
        %1319 = vmatprep.subr.mxu0 0.0
        %1320 = vmatpush1.msra.mxu0 0.0
        %1321 = vmatprep.subr.mxu0 0.0
        %1322 = vmatpush1.msra.mxu0 0.0
        %1323 = vmatprep.subr.mxu0 0.0
        %1324 = vmatpush1.msra.mxu0 0.0
        %1325 = vmatprep.subr.mxu0 0.0
        %1326 = vmatpush1.msra.mxu0 0.0
        %1327 = vmatprep.subr.mxu0 0.0
        %1328 = vmatpush1.msra.mxu0 0.0
        %1329 = vmatprep.subr.mxu0 0.0
        %1330 = vmatpush1.msra.mxu0 0.0
        %1331 = vmatprep.subr.mxu0 0.0
        %1332 = vmatpush1.msra.mxu0 0.0
        %1333 = vmatprep.subr.mxu0 0.0
        %1334 = vmatpush1.msra.mxu0 0.0
        %1335 = vmatprep.subr.mxu0 0.0
        %1336 = vmatpush1.msra.mxu0 0.0
        %1337 = vmatprep.subr.mxu0 0.0
        %1338 = vmatpush1.msra.mxu0 0.0
        %1339 = vmatprep.subr.mxu0 0.0
        %1340 = vmatpush1.msra.mxu0 0.0
        %1341 = vmatprep.subr.mxu0 0.0
        %1342 = vmatpush1.msra.mxu0 0.0
        %1343 = vmatprep.subr.mxu0 0.0
        %1344 = vmatpush1.msra.mxu0 0.0
        %1345 = vmatprep.subr.mxu0 0.0
        %1346 = vmatpush1.msra.mxu0 %v662
        %1347 = vmatprep.subr.mxu0 0.0
        %1348 = vmatpush2.msra.mxu0 0.0
        %1349 = vmatprep.subr.mxu0 0.0
        %1350 = vmatpush2.msra.mxu0 0.0
        %1351 = vmatprep.subr.mxu0 0.0
        %1352 = vmatpush2.msra.mxu0 0.0
        %1353 = vmatprep.subr.mxu0 0.0
        %1354 = vmatpush2.msra.mxu0 0.0
        %1355 = vmatprep.subr.mxu0 0.0
        %1356 = vmatpush2.msra.mxu0 0.0
        %1357 = vmatprep.subr.mxu0 0.0
        %1358 = vmatpush2.msra.mxu0 0.0
        %1359 = vmatprep.subr.mxu0 0.0
        %1360 = vmatpush2.msra.mxu0 0.0
        %1361 = vmatprep.subr.mxu0 0.0
        %1362 = vmatpush2.msra.mxu0 0.0
        %1363 = vmatprep.subr.mxu0 0.0
        %1364 = vmatpush2.msra.mxu0 0.0
        %1365 = vmatprep.subr.mxu0 0.0
        %1366 = vmatpush2.msra.mxu0 0.0
        %1367 = vmatprep.subr.mxu0 0.0
        %1368 = vmatpush2.msra.mxu0 0.0
        %1369 = vmatprep.subr.mxu0 0.0
        %1370 = vmatpush2.msra.mxu0 0.0
        %1371 = vmatprep.subr.mxu0 0.0
        %1372 = vmatpush2.msra.mxu0 0.0
        %1373 = vmatprep.subr.mxu0 0.0
        %1374 = vmatpush2.msra.mxu0 0.0
        %1375 = vmatprep.subr.mxu0 0.0
        %1376 = vmatpush2.msra.mxu0 0.0
        %1377 = vmatprep.subr.mxu0 0.0
        %1378 = vmatpush2.msra.mxu0 0.0
        %1379 = vmatprep.mubr.f32.mxu0 0.0
        %1380 = vmatmul.mubr.f32.gmra.mxu0 %v1313
        %v1381 = vpop.f32.mrf.mxu0
        %v1382 = vadd.f32 0.0, %v1381
        %v1383 = vpop.f32.mrf.mxu0
        %1384 = vdwg.mxu0
        %v1385 = vadd.f32 %v1144, %v1382
        %1386 = vrot.lane.b32.xlu0 %v659, 104
        %v1387 = vpop.permute.xlu0 %1386
        %1388 = vrot.lane.b32.xlu0 %v656, 72
        %v1389 = vpop.permute.xlu0 %1388
        %v1390 = vsel %vm673, %v1387, 0
        %v1392 = vsel %vm673, %v1389, 0
        %1394 = vmatprep.subr.mxu0 0.0
        %1395 = vmatpush1.xpose.msra.mxu0 0.0
        %1396 = vmatprep.subr.mxu0 0.0
        %1397 = vmatpush1.xpose.msra.mxu0 0.0
        %1398 = vmatprep.subr.mxu0 0.0
        %1399 = vmatpush1.xpose.msra.mxu0 0.0
        %1400 = vmatprep.subr.mxu0 0.0
        %1401 = vmatpush1.xpose.msra.mxu0 0.0
        %1402 = vmatprep.subr.mxu0 0.0
        %1403 = vmatpush1.xpose.msra.mxu0 0.0
        %1404 = vmatprep.subr.mxu0 0.0
        %1405 = vmatpush1.xpose.msra.mxu0 0.0
        %1406 = vmatprep.subr.mxu0 0.0
        %1407 = vmatpush1.xpose.msra.mxu0 0.0
        %1408 = vmatprep.subr.mxu0 0.0
        %1409 = vmatpush1.xpose.msra.mxu0 0.0
        %1410 = vmatprep.subr.mxu0 0.0
        %1411 = vmatpush1.xpose.msra.mxu0 0.0
        %1412 = vmatprep.subr.mxu0 0.0
        %1413 = vmatpush1.xpose.msra.mxu0 0.0
        %1414 = vmatprep.subr.mxu0 0.0
        %1415 = vmatpush1.xpose.msra.mxu0 0.0
        %1416 = vmatprep.subr.mxu0 0.0
        %1417 = vmatpush1.xpose.msra.mxu0 0.0
        %1418 = vmatprep.subr.mxu0 0.0
        %1419 = vmatpush1.xpose.msra.mxu0 0.0
        %1420 = vmatprep.subr.mxu0 0.0
        %1421 = vmatpush1.xpose.msra.mxu0 0.0
        %1422 = vmatprep.subr.mxu0 0.0
        %1423 = vmatpush1.xpose.msra.mxu0 0.0
        %1424 = vmatprep.subr.mxu0 0.0
        %1425 = vmatpush1.xpose.msra.mxu0 %v1392
        %1426 = vmatprep.subr.mxu0 0.0
        %1427 = vmatpush2.xpose.msra.mxu0 0.0
        %1428 = vmatprep.subr.mxu0 0.0
        %1429 = vmatpush2.xpose.msra.mxu0 0.0
        %1430 = vmatprep.subr.mxu0 0.0
        %1431 = vmatpush2.xpose.msra.mxu0 0.0
        %1432 = vmatprep.subr.mxu0 0.0
        %1433 = vmatpush2.xpose.msra.mxu0 0.0
        %1434 = vmatprep.subr.mxu0 0.0
        %1435 = vmatpush2.xpose.msra.mxu0 0.0
        %1436 = vmatprep.subr.mxu0 0.0
        %1437 = vmatpush2.xpose.msra.mxu0 0.0
        %1438 = vmatprep.subr.mxu0 0.0
        %1439 = vmatpush2.xpose.msra.mxu0 0.0
        %1440 = vmatprep.subr.mxu0 0.0
        %1441 = vmatpush2.xpose.msra.mxu0 0.0
        %1442 = vmatprep.subr.mxu0 0.0
        %1443 = vmatpush2.xpose.msra.mxu0 0.0
        %1444 = vmatprep.subr.mxu0 0.0
        %1445 = vmatpush2.xpose.msra.mxu0 0.0
        %1446 = vmatprep.subr.mxu0 0.0
        %1447 = vmatpush2.xpose.msra.mxu0 0.0
        %1448 = vmatprep.subr.mxu0 0.0
        %1449 = vmatpush2.xpose.msra.mxu0 0.0
        %1450 = vmatprep.subr.mxu0 0.0
        %1451 = vmatpush2.xpose.msra.mxu0 0.0
        %1452 = vmatprep.subr.mxu0 0.0
        %1453 = vmatpush2.xpose.msra.mxu0 0.0
        %1454 = vmatprep.subr.mxu0 0.0
        %1455 = vmatpush2.xpose.msra.mxu0 0.0
        %1456 = vmatprep.subr.mxu0 0.0
        %1457 = vmatpush2.xpose.msra.mxu0 0.0
        %1458 = vmatprep.mubr.f32.mxu0 0.0
        %1459 = vmatmul.mubr.f32.gmra.mxu0 %v1390
        %v1460 = vpop.f32.mrf.mxu0
        %v1461 = vadd.f32 %v668, %v1460
        %v1462 = vpop.f32.mrf.mxu0
        %1463 = vdwg.mxu0
        %v1464 = vsel %vm673, %v1461, -inf
        %1465 = vmax.xlane.f32.xlu0 %v1464
        %v1466 = vpop.xlane.xlu0 %1465
        %v1467 = vsub.f32 %v1461, %v1466
        %v1468 = vmul.f32 %v1467, 1.442695
        %v1469 = vpow.pop %v1468
        %v1470 = vsel %vm673, %v1469, 0.0
        %1471 = vadd.xlane.f32.xlu0 %v1470
        %v1472 = vpop.xlane.xlu0 %1471
        %v1473 = vrcp.pop %v1472
        %v1474 = vmul.f32 %v1469, %v1473
        %1475 = vrot.lane.b32.xlu0 %v656, 40
        %v1476 = vpop.permute.xlu0 %1475
        %v1479 = vsel %vm673, %v1474, 0
        %1481 = vmatprep.subr.mxu0 0.0
        %1482 = vmatpush1.msra.mxu0 0.0
        %1483 = vmatprep.subr.mxu0 0.0
        %1484 = vmatpush1.msra.mxu0 0.0
        %1485 = vmatprep.subr.mxu0 0.0
        %1486 = vmatpush1.msra.mxu0 0.0
        %1487 = vmatprep.subr.mxu0 0.0
        %1488 = vmatpush1.msra.mxu0 0.0
        %1489 = vmatprep.subr.mxu0 0.0
        %1490 = vmatpush1.msra.mxu0 0.0
        %1491 = vmatprep.subr.mxu0 0.0
        %1492 = vmatpush1.msra.mxu0 0.0
        %1493 = vmatprep.subr.mxu0 0.0
        %1494 = vmatpush1.msra.mxu0 0.0
        %1495 = vmatprep.subr.mxu0 0.0
        %1496 = vmatpush1.msra.mxu0 0.0
        %1497 = vmatprep.subr.mxu0 0.0
        %1498 = vmatpush1.msra.mxu0 0.0
        %1499 = vmatprep.subr.mxu0 0.0
        %1500 = vmatpush1.msra.mxu0 0.0
        %1501 = vmatprep.subr.mxu0 0.0
        %1502 = vmatpush1.msra.mxu0 0.0
        %1503 = vmatprep.subr.mxu0 0.0
        %1504 = vmatpush1.msra.mxu0 0.0
        %1505 = vmatprep.subr.mxu0 0.0
        %1506 = vmatpush1.msra.mxu0 0.0
        %1507 = vmatprep.subr.mxu0 0.0
        %1508 = vmatpush1.msra.mxu0 0.0
        %1509 = vmatprep.subr.mxu0 0.0
        %1510 = vmatpush1.msra.mxu0 0.0
        %1511 = vmatprep.subr.mxu0 0.0
        %1512 = vmatpush1.msra.mxu0 %v1476
        %1513 = vmatprep.subr.mxu0 0.0
        %1514 = vmatpush2.msra.mxu0 0.0
        %1515 = vmatprep.subr.mxu0 0.0
        %1516 = vmatpush2.msra.mxu0 0.0
        %1517 = vmatprep.subr.mxu0 0.0
        %1518 = vmatpush2.msra.mxu0 0.0
        %1519 = vmatprep.subr.mxu0 0.0
        %1520 = vmatpush2.msra.mxu0 0.0
        %1521 = vmatprep.subr.mxu0 0.0
        %1522 = vmatpush2.msra.mxu0 0.0
        %1523 = vmatprep.subr.mxu0 0.0
        %1524 = vmatpush2.msra.mxu0 0.0
        %1525 = vmatprep.subr.mxu0 0.0
        %1526 = vmatpush2.msra.mxu0 0.0
        %1527 = vmatprep.subr.mxu0 0.0
        %1528 = vmatpush2.msra.mxu0 0.0
        %1529 = vmatprep.subr.mxu0 0.0
        %1530 = vmatpush2.msra.mxu0 0.0
        %1531 = vmatprep.subr.mxu0 0.0
        %1532 = vmatpush2.msra.mxu0 0.0
        %1533 = vmatprep.subr.mxu0 0.0
        %1534 = vmatpush2.msra.mxu0 0.0
        %1535 = vmatprep.subr.mxu0 0.0
        %1536 = vmatpush2.msra.mxu0 0.0
        %1537 = vmatprep.subr.mxu0 0.0
        %1538 = vmatpush2.msra.mxu0 0.0
        %1539 = vmatprep.subr.mxu0 0.0
        %1540 = vmatpush2.msra.mxu0 0.0
        %1541 = vmatprep.subr.mxu0 0.0
        %1542 = vmatpush2.msra.mxu0 0.0
        %1543 = vmatprep.subr.mxu0 0.0
        %1544 = vmatpush2.msra.mxu0 0.0
        %1545 = vmatprep.mubr.f32.mxu0 0.0
        %1546 = vmatmul.mubr.f32.gmra.mxu0 %v1479
        %v1547 = vpop.f32.mrf.mxu0
        %v1548 = vadd.f32 0.0, %v1547
        %v1549 = vpop.f32.mrf.mxu0
        %1550 = vdwg.mxu0
        %v1552 = vsel %vm673, %v1548, 0
        %1554 = vmatprep.subr.mxu0 0.0
        %1555 = vmatpush1.msra.mxu0 0.0
        %1556 = vmatprep.subr.mxu0 0.0
        %1557 = vmatpush1.msra.mxu0 0.0
        %1558 = vmatprep.subr.mxu0 0.0
        %1559 = vmatpush1.msra.mxu0 0.0
        %1560 = vmatprep.subr.mxu0 0.0
        %1561 = vmatpush1.msra.mxu0 0.0
        %1562 = vmatprep.subr.mxu0 0.0
        %1563 = vmatpush1.msra.mxu0 0.0
        %1564 = vmatprep.subr.mxu0 0.0
        %1565 = vmatpush1.msra.mxu0 0.0
        %1566 = vmatprep.subr.mxu0 0.0
        %1567 = vmatpush1.msra.mxu0 0.0
        %1568 = vmatprep.subr.mxu0 0.0
        %1569 = vmatpush1.msra.mxu0 0.0
        %1570 = vmatprep.subr.mxu0 0.0
        %1571 = vmatpush1.msra.mxu0 0.0
        %1572 = vmatprep.subr.mxu0 0.0
        %1573 = vmatpush1.msra.mxu0 0.0
        %1574 = vmatprep.subr.mxu0 0.0
        %1575 = vmatpush1.msra.mxu0 0.0
        %1576 = vmatprep.subr.mxu0 0.0
        %1577 = vmatpush1.msra.mxu0 0.0
        %1578 = vmatprep.subr.mxu0 0.0
        %1579 = vmatpush1.msra.mxu0 0.0
        %1580 = vmatprep.subr.mxu0 0.0
        %1581 = vmatpush1.msra.mxu0 0.0
        %1582 = vmatprep.subr.mxu0 0.0
        %1583 = vmatpush1.msra.mxu0 0.0
        %1584 = vmatprep.subr.mxu0 0.0
        %1585 = vmatpush1.msra.mxu0 %v663
        %1586 = vmatprep.subr.mxu0 0.0
        %1587 = vmatpush2.msra.mxu0 0.0
        %1588 = vmatprep.subr.mxu0 0.0
        %1589 = vmatpush2.msra.mxu0 0.0
        %1590 = vmatprep.subr.mxu0 0.0
        %1591 = vmatpush2.msra.mxu0 0.0
        %1592 = vmatprep.subr.mxu0 0.0
        %1593 = vmatpush2.msra.mxu0 0.0
        %1594 = vmatprep.subr.mxu0 0.0
        %1595 = vmatpush2.msra.mxu0 0.0
        %1596 = vmatprep.subr.mxu0 0.0
        %1597 = vmatpush2.msra.mxu0 0.0
        %1598 = vmatprep.subr.mxu0 0.0
        %1599 = vmatpush2.msra.mxu0 0.0
        %1600 = vmatprep.subr.mxu0 0.0
        %1601 = vmatpush2.msra.mxu0 0.0
        %1602 = vmatprep.subr.mxu0 0.0
        %1603 = vmatpush2.msra.mxu0 0.0
        %1604 = vmatprep.subr.mxu0 0.0
        %1605 = vmatpush2.msra.mxu0 0.0
        %1606 = vmatprep.subr.mxu0 0.0
        %1607 = vmatpush2.msra.mxu0 0.0
        %1608 = vmatprep.subr.mxu0 0.0
        %1609 = vmatpush2.msra.mxu0 0.0
        %1610 = vmatprep.subr.mxu0 0.0
        %1611 = vmatpush2.msra.mxu0 0.0
        %1612 = vmatprep.subr.mxu0 0.0
        %1613 = vmatpush2.msra.mxu0 0.0
        %1614 = vmatprep.subr.mxu0 0.0
        %1615 = vmatpush2.msra.mxu0 0.0
        %1616 = vmatprep.subr.mxu0 0.0
        %1617 = vmatpush2.msra.mxu0 0.0
        %1618 = vmatprep.mubr.f32.mxu0 0.0
        %1619 = vmatmul.mubr.f32.gmra.mxu0 %v1552
        %v1620 = vpop.f32.mrf.mxu0
        %v1621 = vadd.f32 0.0, %v1620
        %v1622 = vpop.f32.mrf.mxu0
        %1623 = vdwg.mxu0
        %v1624 = vadd.f32 %v1385, %v1621
        %v1625 = vadd.f32 %v547, %v1624
        %v1626 = vsel %vm394, %v1625, 0.0
        %1627 = vadd.xlane.f32.xlu0 %v1626
        %v1628 = vpop.xlane.xlu0 %1627
        %v1629 = vmul.f32 %v1628, %v553
        %v1630 = vsub.f32 %v1625, %v1629
        %v1631 = vmul.f32 %v1630, %v1630
        %v1632 = vsel %vm394, %v1631, 0.0
        %1633 = vadd.xlane.f32.xlu0 %v1632
        %v1634 = vpop.xlane.xlu0 %1633
        %v1635 = vmul.f32 %v1634, %v560
        %v1636 = vrsqrt.pop %v1635
        %v1637 = vmul.f32 %v1635, %v1636
        %vm1638 = vcmp.eq.f32.partialorder %v1635, inf
        %v1639 = vsel %vm1638, %v1635, %v1637
        %vm1640 = vcmp.eq.f32.partialorder %v1635, 0.0
        %v1641 = vand.u32 %v1635, 2147483648
        %v1642 = vsel %vm1640, %v1641, %v1639
        %v1643 = vlaneseq
        %v1644 = vshrl.u32 %v1643, 7
        %v1645 = vsub.s32 2, %v1644
        %v1646 = vrot.slane %v383, %v1645
        %v1647 = vmul.f32 %v1646, %v1630
        %v1648 = vadd.f32 %v1642, 1e-06
        %v1649 = vrcp.pop %v1648
        %v1650 = vmul.f32 %v1647, %v1649
        %v1651 = vlaneseq
        %v1652 = vshrl.u32 %v1651, 7
        %v1653 = vsub.s32 3, %v1652
        %v1654 = vrot.slane %v383, %v1653
        %v1655 = vadd.f32 %v1650, %v1654
        %v1656 = vld [vmem:[%s7] sm:$0xff]
        %v1657 = vld [vmem:[%s7 + $0x8] sm:$0xff]
        %v1658 = vld [vmem:[%s7 + $0x10] sm:$0xff]
        %v1659 = vld [vmem:[%s7 + $0x18] sm:$0xff]
        %v1660 = vlaneseq
        %v1661 = vshrl.u32 %v1660, 7
        %v1662 = vsub.s32 4, %v1661
        %v1663 = vrot.slane %v383, %v1662
        %v1665 = vsel %vm394, %v1655, 0
        %1667 = vmatprep.subr.mxu0 0.0
        %1668 = vmatpush1.msra.mxu0 0.0
        %1669 = vmatprep.subr.mxu0 0.0
        %1670 = vmatpush1.msra.mxu0 0.0
        %1671 = vmatprep.subr.mxu0 0.0
        %1672 = vmatpush1.msra.mxu0 0.0
        %1673 = vmatprep.subr.mxu0 0.0
        %1674 = vmatpush1.msra.mxu0 0.0
        %1675 = vmatprep.subr.mxu0 0.0
        %1676 = vmatpush1.msra.mxu0 0.0
        %1677 = vmatprep.subr.mxu0 0.0
        %1678 = vmatpush1.msra.mxu0 0.0
        %1679 = vmatprep.subr.mxu0 0.0
        %1680 = vmatpush1.msra.mxu0 0.0
        %1681 = vmatprep.subr.mxu0 0.0
        %1682 = vmatpush1.msra.mxu0 0.0
        %1683 = vmatprep.subr.mxu0 0.0
        %1684 = vmatpush1.msra.mxu0 0.0
        %1685 = vmatprep.subr.mxu0 0.0
        %1686 = vmatpush1.msra.mxu0 0.0
        %1687 = vmatprep.subr.mxu0 0.0
        %1688 = vmatpush1.msra.mxu0 0.0
        %1689 = vmatprep.subr.mxu0 0.0
        %1690 = vmatpush1.msra.mxu0 0.0
        %1691 = vmatprep.subr.mxu0 0.0
        %1692 = vmatpush1.msra.mxu0 %v1659
        %1693 = vmatprep.subr.mxu0 0.0
        %1694 = vmatpush1.msra.mxu0 %v1658
        %1695 = vmatprep.subr.mxu0 0.0
        %1696 = vmatpush1.msra.mxu0 %v1657
        %1697 = vmatprep.subr.mxu0 0.0
        %1698 = vmatpush1.msra.mxu0 %v1656
        %1699 = vmatprep.subr.mxu0 0.0
        %1700 = vmatpush2.msra.mxu0 0.0
        %1701 = vmatprep.subr.mxu0 0.0
        %1702 = vmatpush2.msra.mxu0 0.0
        %1703 = vmatprep.subr.mxu0 0.0
        %1704 = vmatpush2.msra.mxu0 0.0
        %1705 = vmatprep.subr.mxu0 0.0
        %1706 = vmatpush2.msra.mxu0 0.0
        %1707 = vmatprep.subr.mxu0 0.0
        %1708 = vmatpush2.msra.mxu0 0.0
        %1709 = vmatprep.subr.mxu0 0.0
        %1710 = vmatpush2.msra.mxu0 0.0
        %1711 = vmatprep.subr.mxu0 0.0
        %1712 = vmatpush2.msra.mxu0 0.0
        %1713 = vmatprep.subr.mxu0 0.0
        %1714 = vmatpush2.msra.mxu0 0.0
        %1715 = vmatprep.subr.mxu0 0.0
        %1716 = vmatpush2.msra.mxu0 0.0
        %1717 = vmatprep.subr.mxu0 0.0
        %1718 = vmatpush2.msra.mxu0 0.0
        %1719 = vmatprep.subr.mxu0 0.0
        %1720 = vmatpush2.msra.mxu0 0.0
        %1721 = vmatprep.subr.mxu0 0.0
        %1722 = vmatpush2.msra.mxu0 0.0
        %1723 = vmatprep.subr.mxu0 0.0
        %1724 = vmatpush2.msra.mxu0 0.0
        %1725 = vmatprep.subr.mxu0 0.0
        %1726 = vmatpush2.msra.mxu0 0.0
        %1727 = vmatprep.subr.mxu0 0.0
        %1728 = vmatpush2.msra.mxu0 0.0
        %1729 = vmatprep.subr.mxu0 0.0
        %1730 = vmatpush2.msra.mxu0 0.0
        %1731 = vmatprep.mubr.f32.mxu0 0.0
        %1732 = vmatmul.mubr.f32.gmra.mxu0 %v1665
        %v1733 = vpop.f32.mrf.mxu0
        %v1734 = vadd.f32 %v1663, %v1733
        %v1735 = vpop.f32.mrf.mxu0
        %1736 = vdwg.mxu0
        %v1737 = vmax.f32 %v1734, 0.0
        %v1738 = vld [vmem:[%s8] sm:$0xff]
        %v1739 = vld [vmem:[%s8 + $0x8] sm:$0xff]
        %v1740 = vld [vmem:[%s8 + $0x10] sm:$0xff]
        %v1741 = vld [vmem:[%s8 + $0x18] sm:$0xff]
        %v1742 = vld [vmem:[%s8 + $0x20] sm:$0xff]
        %v1743 = vld [vmem:[%s8 + $0x28] sm:$0xff]
        %v1744 = vld [vmem:[%s8 + $0x30] sm:$0xff]
        %v1745 = vld [vmem:[%s8 + $0x38] sm:$0xff]
        %v1746 = vlaneseq
        %v1747 = vshrl.u32 %v1746, 7
        %v1748 = vsub.s32 5, %v1747
        %v1749 = vrot.slane %v383, %v1748
        %vm1750 = vcmask 523264
        %v1752 = vsel %vm1750, %v1737, 0
        %1754 = vmatprep.subr.mxu0 0.0
        %1755 = vmatpush1.msra.mxu0 0.0
        %1756 = vmatprep.subr.mxu0 0.0
        %1757 = vmatpush1.msra.mxu0 0.0
        %1758 = vmatprep.subr.mxu0 0.0
        %1759 = vmatpush1.msra.mxu0 0.0
        %1760 = vmatprep.subr.mxu0 0.0
        %1761 = vmatpush1.msra.mxu0 0.0
        %1762 = vmatprep.subr.mxu0 0.0
        %1763 = vmatpush1.msra.mxu0 0.0
        %1764 = vmatprep.subr.mxu0 0.0
        %1765 = vmatpush1.msra.mxu0 0.0
        %1766 = vmatprep.subr.mxu0 0.0
        %1767 = vmatpush1.msra.mxu0 0.0
        %1768 = vmatprep.subr.mxu0 0.0
        %1769 = vmatpush1.msra.mxu0 0.0
        %1770 = vmatprep.subr.mxu0 0.0
        %1771 = vmatpush1.msra.mxu0 %v1745
        %1772 = vmatprep.subr.mxu0 0.0
        %1773 = vmatpush1.msra.mxu0 %v1744
        %1774 = vmatprep.subr.mxu0 0.0
        %1775 = vmatpush1.msra.mxu0 %v1743
        %1776 = vmatprep.subr.mxu0 0.0
        %1777 = vmatpush1.msra.mxu0 %v1742
        %1778 = vmatprep.subr.mxu0 0.0
        %1779 = vmatpush1.msra.mxu0 %v1741
        %1780 = vmatprep.subr.mxu0 0.0
        %1781 = vmatpush1.msra.mxu0 %v1740
        %1782 = vmatprep.subr.mxu0 0.0
        %1783 = vmatpush1.msra.mxu0 %v1739
        %1784 = vmatprep.subr.mxu0 0.0
        %1785 = vmatpush1.msra.mxu0 %v1738
        %1786 = vmatprep.subr.mxu0 0.0
        %1787 = vmatpush2.msra.mxu0 0.0
        %1788 = vmatprep.subr.mxu0 0.0
        %1789 = vmatpush2.msra.mxu0 0.0
        %1790 = vmatprep.subr.mxu0 0.0
        %1791 = vmatpush2.msra.mxu0 0.0
        %1792 = vmatprep.subr.mxu0 0.0
        %1793 = vmatpush2.msra.mxu0 0.0
        %1794 = vmatprep.subr.mxu0 0.0
        %1795 = vmatpush2.msra.mxu0 0.0
        %1796 = vmatprep.subr.mxu0 0.0
        %1797 = vmatpush2.msra.mxu0 0.0
        %1798 = vmatprep.subr.mxu0 0.0
        %1799 = vmatpush2.msra.mxu0 0.0
        %1800 = vmatprep.subr.mxu0 0.0
        %1801 = vmatpush2.msra.mxu0 0.0
        %1802 = vmatprep.subr.mxu0 0.0
        %1803 = vmatpush2.msra.mxu0 0.0
        %1804 = vmatprep.subr.mxu0 0.0
        %1805 = vmatpush2.msra.mxu0 0.0
        %1806 = vmatprep.subr.mxu0 0.0
        %1807 = vmatpush2.msra.mxu0 0.0
        %1808 = vmatprep.subr.mxu0 0.0
        %1809 = vmatpush2.msra.mxu0 0.0
        %1810 = vmatprep.subr.mxu0 0.0
        %1811 = vmatpush2.msra.mxu0 0.0
        %1812 = vmatprep.subr.mxu0 0.0
        %1813 = vmatpush2.msra.mxu0 0.0
        %1814 = vmatprep.subr.mxu0 0.0
        %1815 = vmatpush2.msra.mxu0 0.0
        %1816 = vmatprep.subr.mxu0 0.0
        %1817 = vmatpush2.msra.mxu0 0.0
        %1818 = vmatprep.mubr.f32.mxu0 0.0
        %1819 = vmatmul.mubr.f32.gmra.mxu0 %v1752
        %v1820 = vpop.f32.mrf.mxu0
        %v1821 = vadd.f32 %v1749, %v1820
        %v1822 = vpop.f32.mrf.mxu0
        %1823 = vdwg.mxu0
        %v1824 = vadd.f32 %v1625, %v1821
        %v1825 = vsel %vm394, %v1824, 0.0
        %1826 = vadd.xlane.f32.xlu0 %v1825
        %v1827 = vpop.xlane.xlu0 %1826
        %v1828 = vmul.f32 %v1827, %v553
        %v1829 = vsub.f32 %v1824, %v1828
        %v1830 = vmul.f32 %v1829, %v1829
        %v1831 = vsel %vm394, %v1830, 0.0
        %1832 = vadd.xlane.f32.xlu0 %v1831
        %v1833 = vpop.xlane.xlu0 %1832
        %v1834 = vmul.f32 %v1833, %v560
        %v1835 = vrsqrt.pop %v1834
        %v1836 = vmul.f32 %v1834, %v1835
        %vm1837 = vcmp.eq.f32.partialorder %v1834, inf
        %v1838 = vsel %vm1837, %v1834, %v1836
        %vm1839 = vcmp.eq.f32.partialorder %v1834, 0.0
        %v1840 = vand.u32 %v1834, 2147483648
        %v1841 = vsel %vm1839, %v1840, %v1838
        %v1842 = vlaneseq
        %v1843 = vshrl.u32 %v1842, 7
        %v1844 = vsub.s32 6, %v1843
        %v1845 = vrot.slane %v383, %v1844
        %v1846 = vmul.f32 %v1845, %v1829
        %v1847 = vadd.f32 %v1841, 1e-06
        %v1848 = vrcp.pop %v1847
        %v1849 = vmul.f32 %v1846, %v1848
        %v1850 = vlaneseq
        %v1851 = vshrl.u32 %v1850, 7
        %v1852 = vsub.s32 7, %v1851
        %v1853 = vrot.slane %v383, %v1852
        %v1854 = vadd.f32 %v1849, %v1853
        %1855 = vst.msk [vmem:[%s372] sm:$0xff] %vm394, %v1854
        %s1856 = sand.u32 %s257, 1
        %s1857 = scalar_lea.sflag [#allocation3], %s1856
        %s1858 = sand.u32 %s257, 1
        %s1859 = smul.addr %s1858, 8
        %s1860 = scalar_lea.vmem [#allocation2], %s1859
        // Predicated region
        $region61: #{_forward.1} parent=59 // pred_check
          %p1861 = pneg %p267
        $region62: #{_forward.1} parent=59 // pred_check_branch
          %1863 = sbr.rel (%p1861) target = $region64
        $region63: #{_forward.1} parent=59 // pred_region
          %s1865 = ssub.s32 128, 128
          %1866 = vsyncadd %s1857, %s1865
          %s1867 = smul.addr %s24, 128
          %s1868 = scalar_lea.hbm %s10, %s1867
          %s1870 = sshll.u32 %s1860, 4
          %s1871 = int_to_ptr.vmem [resolvable:$true] %s1870
          %1873 = dma.vmem_to_hbm [thread:$0]  %s1871, 128, %s1868, %s1857
        $region64: #{_forward.1} parent=59 // pred_fallthru
          _
      $region60: #{_forward.1} parent=5 // pred_fallthru
        _
      %p1874 = scmp.le.s32.totalorder 2, %s19
      // Predicated region
      $region65: #{_forward.1} parent=5 // pred_check
        %p1875 = pneg %p1874
      $region66: #{_forward.1} parent=5 // pred_check_branch
        %1877 = sbr.rel (%p1875) target = $region68
      $region67: #{_forward.1} parent=5 // pred_region
        %s1878 = ssub.s32 %s19, 2
        // Predicated region
        $region69: #{_forward.1} parent=67 // pred_check
          %p1879 = pneg %p273
        $region70: #{_forward.1} parent=67 // pred_check_branch
          %1881 = sbr.rel (%p1879) target = $region72
        $region71: #{_forward.1} parent=67 // pred_region
          %s1882 = sand.u32 %s258, 1
          %s1883 = scalar_lea.sflag [#allocation3], %s1882
          %s1884 = sand.u32 %s258, 1
          %s1885 = smul.addr %s1884, 8
          %s1886 = scalar_lea.vmem [#allocation2], %s1885
          %1887 = dma.done %s1883, 128
        $region72: #{_forward.1} parent=67 // pred_fallthru
          _
      $region68: #{_forward.1} parent=5 // pred_fallthru
        _
    $region6: #{_forward.1} parent=1 // loop_footer
      %s23 = sadd.s32 1, %s19
    $region7: #{_forward.1} parent=1 // loop_footer_branch
      %18 = sbr.rel target = $region3
    $region8: #{_forward.1} parent=1 // loop_exit
      _
    %1888 = vsyncpa [#allocation3], 1
    %s1889 = scalar_lea.sflag [#allocation3], 1
    %1890 = vsyncpa %s1889, 1

</llo_original>
